<compile_context>
chip_gen: v6e
topology: v6e:2x2x1
jax: 0.10.0
libtpu: 0.0.40
codegen_flags: <defaults>
</compile_context>

<pallas_src>
import functools

import jax
import jax.numpy as jnp
from jax import lax
from jax.experimental import pallas as pl
from jax.experimental.pallas import tpu as pltpu


# ---------------------------------------------------------------------------
# Fused Pallas kernel: one grid step = block_b batch elements
# ---------------------------------------------------------------------------

def _xconnector_kernel(f_ref, dw_ref, db_ref, kvw_ref, kvb_ref, q_ref, slq_ref,
                       vlq_ref, ow_ref, ob_ref, o_ref, *,
                       block_b, src_len, latent_len, num_heads, out_dim,
                       compute_dtype):
    D = out_dim
    hd = D // num_heads
    L = latent_len

    # ---- dense over the whole (block_b * src_len) row block --------------- (R, D)
    feats = f_ref[0].astype(compute_dtype)                    # (R, in_dim), R = block_b*src_len
    x = jnp.dot(feats, dw_ref[...],
                preferred_element_type=jnp.float32) + db_ref[...]

    # ---- fused k/v projection of the feature-derived rows only ------------ (R, 2D)
    kv = jnp.dot(x.astype(compute_dtype), kvw_ref[...],
                 preferred_element_type=jnp.float32) + kvb_ref[...]

    q = q_ref[...]                                            # (L, D) pre-scaled, f32
    v_lq = vlq_ref[...]                                       # (L, D) f32
    ow = ow_ref[...]                                          # (D, D) bf16
    ob = ob_ref[...]                                          # (1, D) f32

    for bi in range(block_b):                                 # static; block_b is small
        row0 = bi * src_len
        k_x = kv[row0:row0 + src_len, 0:D]                    # (src, D)
        v_x = kv[row0:row0 + src_len, D:2 * D]                # (src, D)

        # Per-head attention. Static unroll: num_heads is small here.
        # (For realistic H (8-24) convert to lax.fori_loop(..., unroll=True) and use a
        #  head-major / 128-lane-padded column layout prepared at load time.)
        head_outs = []
        for h in range(num_heads):
            c0 = h * hd
            qh = q[:, c0:c0 + hd]                             # (L, hd)
            kxh = k_x[:, c0:c0 + hd]                          # (src, hd)
            vxh = v_x[:, c0:c0 + hd]                          # (src, hd)
            vlh = v_lq[:, c0:c0 + hd]                         # (L, hd)

            # scores against the feature-derived keys (contract last dims, no explicit k^T)
            s_x = lax.dot_general(qh, kxh, (((1,), (1,)), ((), ())),
                                  preferred_element_type=jnp.float32)   # (L, src)
            # scores against the latent-query keys: precomputed at load time
            s_l = slq_ref[:, h * L:(h + 1) * L]                          # (L, L)

            # joint softmax over both score blocks (no concatenation / (S,D) copy)
            m = jnp.maximum(jnp.max(s_x, axis=-1, keepdims=True),
                            jnp.max(s_l, axis=-1, keepdims=True))
            p_x = jnp.exp(s_x - m)
            p_l = jnp.exp(s_l - m)
            denom = (jnp.sum(p_x, axis=-1, keepdims=True)
                     + jnp.sum(p_l, axis=-1, keepdims=True))
            inv = pl.reciprocal(denom, approx=True)                      # EUP, not VALU divide

            oh = (jnp.dot(p_x, vxh, preferred_element_type=jnp.float32)
                  + jnp.dot(p_l, vlh, preferred_element_type=jnp.float32)) * inv
            head_outs.append(oh)                                          # (L, hd)

        # one full-K out-projection matmul instead of H K=hd accumulations
        ctx = jnp.concatenate(head_outs, axis=1)                          # (L, D)
        out = jnp.dot(ctx.astype(compute_dtype), ow,
                      preferred_element_type=jnp.float32) + ob            # (L, D)
        o_ref[bi] = out.astype(o_ref.dtype)


# ---------------------------------------------------------------------------
# Wrapper: param prep (done once, load time) + fused pallas_call
# ---------------------------------------------------------------------------

def prepare_params(params, *, num_heads, compute_dtype=jnp.bfloat16):
    """Hoist all batch-independent work out of the kernel (done once at load time)."""
    in_dim, D = params["dense_w"].shape
    hd = D // num_heads
    scaling = float(hd) ** -0.5

    lq = params["latent_query"].astype(jnp.float32)                       # (L, D)
    L = lq.shape[0]

    # latent-query side of q/k/v, computed once in f32
    q = (lq @ params["q_w"] + params["q_b"]) * scaling                    # (L, D)
    k_lq = lq @ params["k_w"] + params["k_b"]                             # (L, D)
    v_lq = lq @ params["v_w"] + params["v_b"]                             # (L, D)

    # precompute the per-head (L, L) latent-query score block, stacked along lanes
    s_lq = jnp.concatenate(
        [q[:, h * hd:(h + 1) * hd] @ k_lq[:, h * hd:(h + 1) * hd].T
         for h in range(num_heads)], axis=1)                              # (L, H*L)

    # fused k/v projection for the feature-derived rows only
    kv_w = jnp.concatenate([params["k_w"], params["v_w"]], axis=1)        # (D, 2D)
    kv_b = jnp.concatenate([params["k_b"], params["v_b"]], axis=0)        # (2D,)

    return {
        "dense_w": params["dense_w"].astype(compute_dtype),
        "dense_b": params["dense_b"].reshape(1, D).astype(jnp.float32),
        "kv_w": kv_w.astype(compute_dtype),
        "kv_b": kv_b.reshape(1, 2 * D).astype(jnp.float32),
        "q": q.astype(jnp.float32),
        "s_lq": s_lq.astype(jnp.float32),
        "v_lq": v_lq.astype(jnp.float32),
        "out_w": params["out_w"].astype(compute_dtype),
        "out_b": params["out_b"].reshape(1, D).astype(jnp.float32),
        "compute_dtype": compute_dtype,
    }


def _pick_block_batch(B, src_len, target_rows=512):
    """Largest divisor of B whose row block (block_b * src_len) stays <= target_rows."""
    bt = 1
    for d in range(1, B + 1):
        if B % d == 0 and d * src_len <= max(target_rows, src_len):
            bt = d
    return bt


def xconnector_forward(features, prepped, *, src_len, num_heads, block_b=None):
    """features: (bsz * src_len, input_dim) -> (bsz * latent_query_num, output_dim)."""
    in_dim, D = prepped["dense_w"].shape
    B = features.shape[0] // src_len
    L = prepped["q"].shape[0]
    H = num_heads
    compute_dtype = prepped["compute_dtype"]

    if block_b is None:
        block_b = _pick_block_batch(B, src_len)
    assert B % block_b == 0
    nb = B // block_b
    rows = block_b * src_len

    # free reshape, no transpose: one (rows, in_dim) feature slab per grid step
    f3 = features.reshape(nb, rows, in_dim)

    kernel = functools.partial(
        _xconnector_kernel,
        block_b=block_b, src_len=src_len, latent_len=L, num_heads=H,
        out_dim=D, compute_dtype=compute_dtype)

    out = pl.pallas_call(
        kernel,
        out_shape=jax.ShapeDtypeStruct((B, L, D), features.dtype),
        grid=(nb,),
        in_specs=[
            pl.BlockSpec((1, rows, in_dim), lambda b: (b, 0, 0)),    # features (per step)
            pl.BlockSpec((in_dim, D), lambda b: (0, 0)),             # dense_w   (resident)
            pl.BlockSpec((1, D), lambda b: (0, 0)),                  # dense_b
            pl.BlockSpec((D, 2 * D), lambda b: (0, 0)),              # fused kv_w
            pl.BlockSpec((1, 2 * D), lambda b: (0, 0)),              # fused kv_b
            pl.BlockSpec((L, D), lambda b: (0, 0)),                  # precomputed scaled q
            pl.BlockSpec((L, H * L), lambda b: (0, 0)),              # precomputed lq scores
            pl.BlockSpec((L, D), lambda b: (0, 0)),                  # precomputed v_lq
            pl.BlockSpec((D, D), lambda b: (0, 0)),                  # out_w
            pl.BlockSpec((1, D), lambda b: (0, 0)),                  # out_b
        ],
        out_specs=pl.BlockSpec((block_b, L, D), lambda b: (b, 0, 0)),  # lane-dense (D last)
        compiler_params=pltpu.CompilerParams(
            dimension_semantics=("parallel",),                       # megacore on v7x
            vmem_limit_bytes=64 * 1024 * 1024),                      # lift default scoped limit
    )(f3, prepped["dense_w"], prepped["dense_b"], prepped["kv_w"], prepped["kv_b"],
      prepped["q"], prepped["s_lq"], prepped["v_lq"], prepped["out_w"], prepped["out_b"])

    # (B, L, D) -> (B*L, D): identical to reference x.transpose(0,1).view(-1, D)
    return out.reshape(B * L, D)


# ---------------------------------------------------------------------------
# Pure-JAX reference (for correctness check) and deterministic init
# ---------------------------------------------------------------------------

def reference_forward(features, params, *, src_len, num_heads):
    D = params["dense_w"].shape[1]
    B = features.shape[0] // src_len
    x = features @ params["dense_w"] + params["dense_b"]
    x = x.reshape(B, src_len, D)
    L = params["latent_query"].shape[0]
    lq = jnp.broadcast_to(params["latent_query"][None], (B, L, D))
    kv = jnp.concatenate([x, lq], axis=1)
    S = src_len + L
    hd = D // num_heads
    q = (lq @ params["q_w"] + params["q_b"]) * (float(hd) ** -0.5)
    k = kv @ params["k_w"] + params["k_b"]
    v = kv @ params["v_w"] + params["v_b"]
    q = q.reshape(B, L, num_heads, hd).transpose(0, 2, 1, 3)
    k = k.reshape(B, S, num_heads, hd).transpose(0, 2, 1, 3)
    v = v.reshape(B, S, num_heads, hd).transpose(0, 2, 1, 3)
    s = jnp.einsum("bhld,bhsd->bhls", q, k)
    p = jax.nn.softmax(s, axis=-1)
    o = jnp.einsum("bhls,bhsd->bhld", p, v)
    o = o.transpose(0, 2, 1, 3).reshape(B * L, D)
    return o @ params["out_w"] + params["out_b"]


def init_params(key, input_dim, output_dim, latent_query_num):
    keys = jax.random.split(key, 11)

    def w(k, shape, scale=0.02):
        return jax.random.normal(k, shape, jnp.float32) * scale

    return {
        "dense_w": w(keys[0], (input_dim, output_dim)),
        "dense_b": w(keys[1], (output_dim,)),
        "latent_query": jax.random.normal(keys[2], (latent_query_num, output_dim),
                                          jnp.float32),
        "q_w": w(keys[3], (output_dim, output_dim)),
        "q_b": w(keys[4], (output_dim,)),
        "k_w": w(keys[5], (output_dim, output_dim)),
        "k_b": w(keys[6], (output_dim,)),
        "v_w": w(keys[7], (output_dim, output_dim)),
        "v_b": w(keys[8], (output_dim,)),
        "out_w": w(keys[9], (output_dim, output_dim)),
        "out_b": w(keys[10], (output_dim,)),
    }


if __name__ == "__main__":
    # small, module-consistent shapes
    input_dim = 16
    output_dim = 32
    num_heads = 4            # args.decoder_attention_heads
    latent_query_num = 8     # args.latent_query_num
    bsz = 2
    src_len = 8

    key = jax.random.PRNGKey(0)
    pkey, fkey = jax.random.split(key)
    params = init_params(pkey, input_dim, output_dim, latent_query_num)
    prepped = prepare_params(params, num_heads=num_heads)

    # features: (bsz * src_len, input_dim), as consumed by forward()
    features = jax.random.normal(fkey, (bsz * src_len, input_dim), jnp.float32)

    out = xconnector_forward(features, prepped, src_len=src_len, num_heads=num_heads)
    out = jax.block_until_ready(out)

    assert out.shape == (bsz * latent_query_num, output_dim), out.shape
    assert jnp.all(jnp.isfinite(out))

    ref = reference_forward(features, params, src_len=src_len, num_heads=num_heads)
    # bf16 weights + approx reciprocal => loose-ish tolerance vs pure-f32 reference
    assert jnp.allclose(out, ref, rtol=5e-2, atol=2e-3), (
        float(jnp.max(jnp.abs(out - ref))))

    print("KERNEL_OK")
</pallas_src>

<mosaic_0001>
module attributes {stable_mosaic.version = 11 : i64} {
  func.func @_xconnector_kernel(%arg0: i32, %arg1: memref<1x16x16xf32, #tpu.memory_space<vmem>>, %arg2: memref<16x32xbf16, #tpu.memory_space<vmem>>, %arg3: memref<1x32xf32, #tpu.memory_space<vmem>>, %arg4: memref<32x64xbf16, #tpu.memory_space<vmem>>, %arg5: memref<1x64xf32, #tpu.memory_space<vmem>>, %arg6: memref<8x32xf32, #tpu.memory_space<vmem>>, %arg7: memref<8x32xf32, #tpu.memory_space<vmem>>, %arg8: memref<8x32xf32, #tpu.memory_space<vmem>>, %arg9: memref<32x32xbf16, #tpu.memory_space<vmem>>, %arg10: memref<1x32xf32, #tpu.memory_space<vmem>>, %arg11: memref<2x8x32xf32, #tpu.memory_space<vmem>>) attributes {dimension_semantics = [#tpu.dimension_semantics<parallel>], iteration_bounds = array<i64: 1>, scalar_prefetch = 0 : i64, scratch_operands = 0 : i64, tpu.core_type = #tpu.core_type<tc>, window_params = [{transform_indices = @transform_0, window_bounds = array<i64: 1, 16, 16>}, {pipeline_mode = #tpu.pipeline_mode<synchronous>, transform_indices = @transform_1, window_bounds = array<i64: 16, 32>}, {pipeline_mode = #tpu.pipeline_mode<synchronous>, transform_indices = @transform_2, window_bounds = array<i64: 1, 32>}, {pipeline_mode = #tpu.pipeline_mode<synchronous>, transform_indices = @transform_3, window_bounds = array<i64: 32, 64>}, {pipeline_mode = #tpu.pipeline_mode<synchronous>, transform_indices = @transform_4, window_bounds = array<i64: 1, 64>}, {pipeline_mode = #tpu.pipeline_mode<synchronous>, transform_indices = @transform_5, window_bounds = array<i64: 8, 32>}, {pipeline_mode = #tpu.pipeline_mode<synchronous>, transform_indices = @transform_6, window_bounds = array<i64: 8, 32>}, {pipeline_mode = #tpu.pipeline_mode<synchronous>, transform_indices = @transform_7, window_bounds = array<i64: 8, 32>}, {pipeline_mode = #tpu.pipeline_mode<synchronous>, transform_indices = @transform_8, window_bounds = array<i64: 32, 32>}, {pipeline_mode = #tpu.pipeline_mode<synchronous>, transform_indices = @transform_9, window_bounds = array<i64: 1, 32>}, {transform_indices = @transform_10, window_bounds = array<i64: 2, 8, 32>}]} {
    %c0 = arith.constant 0 : index
    %c0_0 = arith.constant 0 : index
    %c0_1 = arith.constant 0 : index
    %0 = vector.load %arg1[%c0, %c0_0, %c0_1] : memref<1x16x16xf32, #tpu.memory_space<vmem>>, vector<1x16x16xf32>
    %1 = vector.shape_cast %0 : vector<1x16x16xf32> to vector<16x16xf32>
    %2 = arith.truncf %1 : vector<16x16xf32> to vector<16x16xbf16>
    %c0_2 = arith.constant 0 : index
    %c0_3 = arith.constant 0 : index
    %3 = vector.load %arg2[%c0_2, %c0_3] : memref<16x32xbf16, #tpu.memory_space<vmem>>, vector<16x32xbf16>
    %cst = arith.constant dense<0.000000e+00> : vector<16x32xf32>
    %4 = tpu.matmul %2, %3, %cst {dimension_numbers = #tpu.dot_dimension_numbers<[1], [0], [0], [1], [0, 0, 1, 1], [], []>} : vector<16x16xbf16>, vector<16x32xbf16>, vector<16x32xf32> -> vector<16x32xf32>
    %c0_4 = arith.constant 0 : index
    %c0_5 = arith.constant 0 : index
    %5 = vector.load %arg3[%c0_4, %c0_5] : memref<1x32xf32, #tpu.memory_space<vmem>>, vector<1x32xf32>
    %6 = vector.broadcast %5 : vector<1x32xf32> to vector<16x32xf32>
    %7 = arith.addf %4, %6 : vector<16x32xf32>
    %8 = arith.truncf %7 : vector<16x32xf32> to vector<16x32xbf16>
    %c0_6 = arith.constant 0 : index
    %c0_7 = arith.constant 0 : index
    %9 = vector.load %arg4[%c0_6, %c0_7] : memref<32x64xbf16, #tpu.memory_space<vmem>>, vector<32x64xbf16>
    %cst_8 = arith.constant dense<0.000000e+00> : vector<16x64xf32>
    %10 = tpu.matmul %8, %9, %cst_8 {dimension_numbers = #tpu.dot_dimension_numbers<[1], [0], [0], [1], [0, 0, 1, 1], [], []>} : vector<16x32xbf16>, vector<32x64xbf16>, vector<16x64xf32> -> vector<16x64xf32>
    %c0_9 = arith.constant 0 : index
    %c0_10 = arith.constant 0 : index
    %11 = vector.load %arg5[%c0_9, %c0_10] : memref<1x64xf32, #tpu.memory_space<vmem>>, vector<1x64xf32>
    %12 = vector.broadcast %11 : vector<1x64xf32> to vector<16x64xf32>
    %13 = arith.addf %10, %12 : vector<16x64xf32>
    %c0_11 = arith.constant 0 : index
    %c0_12 = arith.constant 0 : index
    %14 = vector.load %arg6[%c0_11, %c0_12] : memref<8x32xf32, #tpu.memory_space<vmem>>, vector<8x32xf32>
    %c0_13 = arith.constant 0 : index
    %c0_14 = arith.constant 0 : index
    %15 = vector.load %arg8[%c0_13, %c0_14] : memref<8x32xf32, #tpu.memory_space<vmem>>, vector<8x32xf32>
    %c0_15 = arith.constant 0 : index
    %c0_16 = arith.constant 0 : index
    %16 = vector.load %arg9[%c0_15, %c0_16] : memref<32x32xbf16, #tpu.memory_space<vmem>>, vector<32x32xbf16>
    %c0_17 = arith.constant 0 : index
    %c0_18 = arith.constant 0 : index
    %17 = vector.load %arg10[%c0_17, %c0_18] : memref<1x32xf32, #tpu.memory_space<vmem>>, vector<1x32xf32>
    %18 = vector.extract_strided_slice %13 {offsets = [0, 0], sizes = [8, 32], strides = [1, 1]} : vector<16x64xf32> to vector<8x32xf32>
    %19 = vector.extract_strided_slice %13 {offsets = [0, 32], sizes = [8, 32], strides = [1, 1]} : vector<16x64xf32> to vector<8x32xf32>
    %20 = vector.extract_strided_slice %14 {offsets = [0, 0], sizes = [8, 8], strides = [1, 1]} : vector<8x32xf32> to vector<8x8xf32>
    %21 = vector.extract_strided_slice %18 {offsets = [0, 0], sizes = [8, 8], strides = [1, 1]} : vector<8x32xf32> to vector<8x8xf32>
    %22 = vector.extract_strided_slice %19 {offsets = [0, 0], sizes = [8, 8], strides = [1, 1]} : vector<8x32xf32> to vector<8x8xf32>
    %23 = vector.extract_strided_slice %15 {offsets = [0, 0], sizes = [8, 8], strides = [1, 1]} : vector<8x32xf32> to vector<8x8xf32>
    %cst_19 = arith.constant dense<0.000000e+00> : vector<8x8xf32>
    %24 = tpu.matmul %20, %21, %cst_19 {dimension_numbers = #tpu.dot_dimension_numbers<[1], [1], [0], [0], [0, 0, 1, 0], [], []>} : vector<8x8xf32>, vector<8x8xf32>, vector<8x8xf32> -> vector<8x8xf32>
    %c0_20 = arith.constant 0 : index
    %c0_21 = arith.constant 0 : index
    %25 = vector.load %arg7[%c0_20, %c0_21] : memref<8x32xf32, #tpu.memory_space<vmem>>, vector<8x8xf32>
    %cst_22 = arith.constant dense<0xFF800000> : vector<8xf32>
    %26 = vector.multi_reduction <maximumf>, %24, %cst_22 [1] : vector<8x8xf32> to vector<8xf32>
    %27 = vector.shape_cast %26 : vector<8xf32> to vector<8x1xf32>
    %cst_23 = arith.constant dense<0xFF800000> : vector<8xf32>
    %28 = vector.multi_reduction <maximumf>, %25, %cst_23 [1] : vector<8x8xf32> to vector<8xf32>
    %29 = vector.shape_cast %28 : vector<8xf32> to vector<8x1xf32>
    %30 = arith.maximumf %27, %29 : vector<8x1xf32>
    %31 = vector.broadcast %30 : vector<8x1xf32> to vector<8x8xf32>
    %32 = arith.subf %24, %31 : vector<8x8xf32>
    %33 = math.exp %32 : vector<8x8xf32>
    %34 = vector.broadcast %30 : vector<8x1xf32> to vector<8x8xf32>
    %35 = arith.subf %25, %34 : vector<8x8xf32>
    %36 = math.exp %35 : vector<8x8xf32>
    %cst_24 = arith.constant dense<0.000000e+00> : vector<8xf32>
    %37 = vector.multi_reduction <add>, %33, %cst_24 [1] : vector<8x8xf32> to vector<8xf32>
    %38 = vector.shape_cast %37 : vector<8xf32> to vector<8x1xf32>
    %cst_25 = arith.constant dense<0.000000e+00> : vector<8xf32>
    %39 = vector.multi_reduction <add>, %36, %cst_25 [1] : vector<8x8xf32> to vector<8xf32>
    %40 = vector.shape_cast %39 : vector<8xf32> to vector<8x1xf32>
    %41 = arith.addf %38, %40 : vector<8x1xf32>
    %42 = tpu.reciprocal %41 {approx = true} : vector<8x1xf32> -> vector<8x1xf32>
    %cst_26 = arith.constant dense<0.000000e+00> : vector<8x8xf32>
    %43 = tpu.matmul %33, %22, %cst_26 {dimension_numbers = #tpu.dot_dimension_numbers<[1], [0], [0], [1], [0, 0, 1, 1], [], []>} : vector<8x8xf32>, vector<8x8xf32>, vector<8x8xf32> -> vector<8x8xf32>
    %cst_27 = arith.constant dense<0.000000e+00> : vector<8x8xf32>
    %44 = tpu.matmul %36, %23, %cst_27 {dimension_numbers = #tpu.dot_dimension_numbers<[1], [0], [0], [1], [0, 0, 1, 1], [], []>} : vector<8x8xf32>, vector<8x8xf32>, vector<8x8xf32> -> vector<8x8xf32>
    %45 = arith.addf %43, %44 : vector<8x8xf32>
    %46 = vector.broadcast %42 : vector<8x1xf32> to vector<8x8xf32>
    %47 = arith.mulf %45, %46 : vector<8x8xf32>
    %48 = vector.extract_strided_slice %14 {offsets = [0, 8], sizes = [8, 8], strides = [1, 1]} : vector<8x32xf32> to vector<8x8xf32>
    %49 = vector.extract_strided_slice %18 {offsets = [0, 8], sizes = [8, 8], strides = [1, 1]} : vector<8x32xf32> to vector<8x8xf32>
    %50 = vector.extract_strided_slice %19 {offsets = [0, 8], sizes = [8, 8], strides = [1, 1]} : vector<8x32xf32> to vector<8x8xf32>
    %51 = vector.extract_strided_slice %15 {offsets = [0, 8], sizes = [8, 8], strides = [1, 1]} : vector<8x32xf32> to vector<8x8xf32>
    %cst_28 = arith.constant dense<0.000000e+00> : vector<8x8xf32>
    %52 = tpu.matmul %48, %49, %cst_28 {dimension_numbers = #tpu.dot_dimension_numbers<[1], [1], [0], [0], [0, 0, 1, 0], [], []>} : vector<8x8xf32>, vector<8x8xf32>, vector<8x8xf32> -> vector<8x8xf32>
    %c0_29 = arith.constant 0 : index
    %c8 = arith.constant 8 : index
    %53 = vector.load %arg7[%c0_29, %c8] : memref<8x32xf32, #tpu.memory_space<vmem>>, vector<8x8xf32>
    %cst_30 = arith.constant dense<0xFF800000> : vector<8xf32>
    %54 = vector.multi_reduction <maximumf>, %52, %cst_30 [1] : vector<8x8xf32> to vector<8xf32>
    %55 = vector.shape_cast %54 : vector<8xf32> to vector<8x1xf32>
    %cst_31 = arith.constant dense<0xFF800000> : vector<8xf32>
    %56 = vector.multi_reduction <maximumf>, %53, %cst_31 [1] : vector<8x8xf32> to vector<8xf32>
    %57 = vector.shape_cast %56 : vector<8xf32> to vector<8x1xf32>
    %58 = arith.maximumf %55, %57 : vector<8x1xf32>
    %59 = vector.broadcast %58 : vector<8x1xf32> to vector<8x8xf32>
    %60 = arith.subf %52, %59 : vector<8x8xf32>
    %61 = math.exp %60 : vector<8x8xf32>
    %62 = vector.broadcast %58 : vector<8x1xf32> to vector<8x8xf32>
    %63 = arith.subf %53, %62 : vector<8x8xf32>
    %64 = math.exp %63 : vector<8x8xf32>
    %cst_32 = arith.constant dense<0.000000e+00> : vector<8xf32>
    %65 = vector.multi_reduction <add>, %61, %cst_32 [1] : vector<8x8xf32> to vector<8xf32>
    %66 = vector.shape_cast %65 : vector<8xf32> to vector<8x1xf32>
    %cst_33 = arith.constant dense<0.000000e+00> : vector<8xf32>
    %67 = vector.multi_reduction <add>, %64, %cst_33 [1] : vector<8x8xf32> to vector<8xf32>
    %68 = vector.shape_cast %67 : vector<8xf32> to vector<8x1xf32>
    %69 = arith.addf %66, %68 : vector<8x1xf32>
    %70 = tpu.reciprocal %69 {approx = true} : vector<8x1xf32> -> vector<8x1xf32>
    %cst_34 = arith.constant dense<0.000000e+00> : vector<8x8xf32>
    %71 = tpu.matmul %61, %50, %cst_34 {dimension_numbers = #tpu.dot_dimension_numbers<[1], [0], [0], [1], [0, 0, 1, 1], [], []>} : vector<8x8xf32>, vector<8x8xf32>, vector<8x8xf32> -> vector<8x8xf32>
    %cst_35 = arith.constant dense<0.000000e+00> : vector<8x8xf32>
    %72 = tpu.matmul %64, %51, %cst_35 {dimension_numbers = #tpu.dot_dimension_numbers<[1], [0], [0], [1], [0, 0, 1, 1], [], []>} : vector<8x8xf32>, vector<8x8xf32>, vector<8x8xf32> -> vector<8x8xf32>
    %73 = arith.addf %71, %72 : vector<8x8xf32>
    %74 = vector.broadcast %70 : vector<8x1xf32> to vector<8x8xf32>
    %75 = arith.mulf %73, %74 : vector<8x8xf32>
    %76 = vector.extract_strided_slice %14 {offsets = [0, 16], sizes = [8, 8], strides = [1, 1]} : vector<8x32xf32> to vector<8x8xf32>
    %77 = vector.extract_strided_slice %18 {offsets = [0, 16], sizes = [8, 8], strides = [1, 1]} : vector<8x32xf32> to vector<8x8xf32>
    %78 = vector.extract_strided_slice %19 {offsets = [0, 16], sizes = [8, 8], strides = [1, 1]} : vector<8x32xf32> to vector<8x8xf32>
    %79 = vector.extract_strided_slice %15 {offsets = [0, 16], sizes = [8, 8], strides = [1, 1]} : vector<8x32xf32> to vector<8x8xf32>
    %cst_36 = arith.constant dense<0.000000e+00> : vector<8x8xf32>
    %80 = tpu.matmul %76, %77, %cst_36 {dimension_numbers = #tpu.dot_dimension_numbers<[1], [1], [0], [0], [0, 0, 1, 0], [], []>} : vector<8x8xf32>, vector<8x8xf32>, vector<8x8xf32> -> vector<8x8xf32>
    %c0_37 = arith.constant 0 : index
    %c16 = arith.constant 16 : index
    %81 = vector.load %arg7[%c0_37, %c16] : memref<8x32xf32, #tpu.memory_space<vmem>>, vector<8x8xf32>
    %cst_38 = arith.constant dense<0xFF800000> : vector<8xf32>
    %82 = vector.multi_reduction <maximumf>, %80, %cst_38 [1] : vector<8x8xf32> to vector<8xf32>
    %83 = vector.shape_cast %82 : vector<8xf32> to vector<8x1xf32>
    %cst_39 = arith.constant dense<0xFF800000> : vector<8xf32>
    %84 = vector.multi_reduction <maximumf>, %81, %cst_39 [1] : vector<8x8xf32> to vector<8xf32>
    %85 = vector.shape_cast %84 : vector<8xf32> to vector<8x1xf32>
    %86 = arith.maximumf %83, %85 : vector<8x1xf32>
    %87 = vector.broadcast %86 : vector<8x1xf32> to vector<8x8xf32>
    %88 = arith.subf %80, %87 : vector<8x8xf32>
    %89 = math.exp %88 : vector<8x8xf32>
    %90 = vector.broadcast %86 : vector<8x1xf32> to vector<8x8xf32>
    %91 = arith.subf %81, %90 : vector<8x8xf32>
    %92 = math.exp %91 : vector<8x8xf32>
    %cst_40 = arith.constant dense<0.000000e+00> : vector<8xf32>
    %93 = vector.multi_reduction <add>, %89, %cst_40 [1] : vector<8x8xf32> to vector<8xf32>
    %94 = vector.shape_cast %93 : vector<8xf32> to vector<8x1xf32>
    %cst_41 = arith.constant dense<0.000000e+00> : vector<8xf32>
    %95 = vector.multi_reduction <add>, %92, %cst_41 [1] : vector<8x8xf32> to vector<8xf32>
    %96 = vector.shape_cast %95 : vector<8xf32> to vector<8x1xf32>
    %97 = arith.addf %94, %96 : vector<8x1xf32>
    %98 = tpu.reciprocal %97 {approx = true} : vector<8x1xf32> -> vector<8x1xf32>
    %cst_42 = arith.constant dense<0.000000e+00> : vector<8x8xf32>
    %99 = tpu.matmul %89, %78, %cst_42 {dimension_numbers = #tpu.dot_dimension_numbers<[1], [0], [0], [1], [0, 0, 1, 1], [], []>} : vector<8x8xf32>, vector<8x8xf32>, vector<8x8xf32> -> vector<8x8xf32>
    %cst_43 = arith.constant dense<0.000000e+00> : vector<8x8xf32>
    %100 = tpu.matmul %92, %79, %cst_43 {dimension_numbers = #tpu.dot_dimension_numbers<[1], [0], [0], [1], [0, 0, 1, 1], [], []>} : vector<8x8xf32>, vector<8x8xf32>, vector<8x8xf32> -> vector<8x8xf32>
    %101 = arith.addf %99, %100 : vector<8x8xf32>
    %102 = vector.broadcast %98 : vector<8x1xf32> to vector<8x8xf32>
    %103 = arith.mulf %101, %102 : vector<8x8xf32>
    %104 = vector.extract_strided_slice %14 {offsets = [0, 24], sizes = [8, 8], strides = [1, 1]} : vector<8x32xf32> to vector<8x8xf32>
    %105 = vector.extract_strided_slice %18 {offsets = [0, 24], sizes = [8, 8], strides = [1, 1]} : vector<8x32xf32> to vector<8x8xf32>
    %106 = vector.extract_strided_slice %19 {offsets = [0, 24], sizes = [8, 8], strides = [1, 1]} : vector<8x32xf32> to vector<8x8xf32>
    %107 = vector.extract_strided_slice %15 {offsets = [0, 24], sizes = [8, 8], strides = [1, 1]} : vector<8x32xf32> to vector<8x8xf32>
    %cst_44 = arith.constant dense<0.000000e+00> : vector<8x8xf32>
    %108 = tpu.matmul %104, %105, %cst_44 {dimension_numbers = #tpu.dot_dimension_numbers<[1], [1], [0], [0], [0, 0, 1, 0], [], []>} : vector<8x8xf32>, vector<8x8xf32>, vector<8x8xf32> -> vector<8x8xf32>
    %c0_45 = arith.constant 0 : index
    %c24 = arith.constant 24 : index
    %109 = vector.load %arg7[%c0_45, %c24] : memref<8x32xf32, #tpu.memory_space<vmem>>, vector<8x8xf32>
    %cst_46 = arith.constant dense<0xFF800000> : vector<8xf32>
    %110 = vector.multi_reduction <maximumf>, %108, %cst_46 [1] : vector<8x8xf32> to vector<8xf32>
    %111 = vector.shape_cast %110 : vector<8xf32> to vector<8x1xf32>
    %cst_47 = arith.constant dense<0xFF800000> : vector<8xf32>
    %112 = vector.multi_reduction <maximumf>, %109, %cst_47 [1] : vector<8x8xf32> to vector<8xf32>
    %113 = vector.shape_cast %112 : vector<8xf32> to vector<8x1xf32>
    %114 = arith.maximumf %111, %113 : vector<8x1xf32>
    %115 = vector.broadcast %114 : vector<8x1xf32> to vector<8x8xf32>
    %116 = arith.subf %108, %115 : vector<8x8xf32>
    %117 = math.exp %116 : vector<8x8xf32>
    %118 = vector.broadcast %114 : vector<8x1xf32> to vector<8x8xf32>
    %119 = arith.subf %109, %118 : vector<8x8xf32>
    %120 = math.exp %119 : vector<8x8xf32>
    %cst_48 = arith.constant dense<0.000000e+00> : vector<8xf32>
    %121 = vector.multi_reduction <add>, %117, %cst_48 [1] : vector<8x8xf32> to vector<8xf32>
    %122 = vector.shape_cast %121 : vector<8xf32> to vector<8x1xf32>
    %cst_49 = arith.constant dense<0.000000e+00> : vector<8xf32>
    %123 = vector.multi_reduction <add>, %120, %cst_49 [1] : vector<8x8xf32> to vector<8xf32>
    %124 = vector.shape_cast %123 : vector<8xf32> to vector<8x1xf32>
    %125 = arith.addf %122, %124 : vector<8x1xf32>
    %126 = tpu.reciprocal %125 {approx = true} : vector<8x1xf32> -> vector<8x1xf32>
    %cst_50 = arith.constant dense<0.000000e+00> : vector<8x8xf32>
    %127 = tpu.matmul %117, %106, %cst_50 {dimension_numbers = #tpu.dot_dimension_numbers<[1], [0], [0], [1], [0, 0, 1, 1], [], []>} : vector<8x8xf32>, vector<8x8xf32>, vector<8x8xf32> -> vector<8x8xf32>
    %cst_51 = arith.constant dense<0.000000e+00> : vector<8x8xf32>
    %128 = tpu.matmul %120, %107, %cst_51 {dimension_numbers = #tpu.dot_dimension_numbers<[1], [0], [0], [1], [0, 0, 1, 1], [], []>} : vector<8x8xf32>, vector<8x8xf32>, vector<8x8xf32> -> vector<8x8xf32>
    %129 = arith.addf %127, %128 : vector<8x8xf32>
    %130 = vector.broadcast %126 : vector<8x1xf32> to vector<8x8xf32>
    %131 = arith.mulf %129, %130 : vector<8x8xf32>
    %132 = tpu.concatenate %47, %75, %103, %131 in 1 : vector<8x8xf32>, vector<8x8xf32>, vector<8x8xf32>, vector<8x8xf32> -> vector<8x32xf32>
    %133 = arith.truncf %132 : vector<8x32xf32> to vector<8x32xbf16>
    %cst_52 = arith.constant dense<0.000000e+00> : vector<8x32xf32>
    %134 = tpu.matmul %133, %16, %cst_52 {dimension_numbers = #tpu.dot_dimension_numbers<[1], [0], [0], [1], [0, 0, 1, 1], [], []>} : vector<8x32xbf16>, vector<32x32xbf16>, vector<8x32xf32> -> vector<8x32xf32>
    %135 = vector.broadcast %17 : vector<1x32xf32> to vector<8x32xf32>
    %136 = arith.addf %134, %135 : vector<8x32xf32>
    %c0_53 = arith.constant 0 : index
    %c0_54 = arith.constant 0 : index
    %c0_55 = arith.constant 0 : index
    %137 = vector.load %arg11[%c0_53, %c0_54, %c0_55] : memref<2x8x32xf32, #tpu.memory_space<vmem>>, vector<1x8x32xf32>
    %138 = vector.shape_cast %137 : vector<1x8x32xf32> to vector<8x32xf32>
    %139 = vector.shape_cast %136 : vector<8x32xf32> to vector<1x8x32xf32>
    tpu.vector_store %arg11[%c0_53, %c0_54, %c0_55], %139 {strides = array<i32>} : memref<2x8x32xf32, #tpu.memory_space<vmem>>, vector<1x8x32xf32>,
    %140 = vector.extract_strided_slice %13 {offsets = [8, 0], sizes = [8, 32], strides = [1, 1]} : vector<16x64xf32> to vector<8x32xf32>
    %141 = vector.extract_strided_slice %13 {offsets = [8, 32], sizes = [8, 32], strides = [1, 1]} : vector<16x64xf32> to vector<8x32xf32>
    %142 = vector.extract_strided_slice %14 {offsets = [0, 0], sizes = [8, 8], strides = [1, 1]} : vector<8x32xf32> to vector<8x8xf32>
    %143 = vector.extract_strided_slice %140 {offsets = [0, 0], sizes = [8, 8], strides = [1, 1]} : vector<8x32xf32> to vector<8x8xf32>
    %144 = vector.extract_strided_slice %141 {offsets = [0, 0], sizes = [8, 8], strides = [1, 1]} : vector<8x32xf32> to vector<8x8xf32>
    %145 = vector.extract_strided_slice %15 {offsets = [0, 0], sizes = [8, 8], strides = [1, 1]} : vector<8x32xf32> to vector<8x8xf32>
    %cst_56 = arith.constant dense<0.000000e+00> : vector<8x8xf32>
    %146 = tpu.matmul %142, %143, %cst_56 {dimension_numbers = #tpu.dot_dimension_numbers<[1], [1], [0], [0], [0, 0, 1, 0], [], []>} : vector<8x8xf32>, vector<8x8xf32>, vector<8x8xf32> -> vector<8x8xf32>
    %c0_57 = arith.constant 0 : index
    %c0_58 = arith.constant 0 : index
    %147 = vector.load %arg7[%c0_57, %c0_58] : memref<8x32xf32, #tpu.memory_space<vmem>>, vector<8x8xf32>
    %cst_59 = arith.constant dense<0xFF800000> : vector<8xf32>
    %148 = vector.multi_reduction <maximumf>, %146, %cst_59 [1] : vector<8x8xf32> to vector<8xf32>
    %149 = vector.shape_cast %148 : vector<8xf32> to vector<8x1xf32>
    %cst_60 = arith.constant dense<0xFF800000> : vector<8xf32>
    %150 = vector.multi_reduction <maximumf>, %147, %cst_60 [1] : vector<8x8xf32> to vector<8xf32>
    %151 = vector.shape_cast %150 : vector<8xf32> to vector<8x1xf32>
    %152 = arith.maximumf %149, %151 : vector<8x1xf32>
    %153 = vector.broadcast %152 : vector<8x1xf32> to vector<8x8xf32>
    %154 = arith.subf %146, %153 : vector<8x8xf32>
    %155 = math.exp %154 : vector<8x8xf32>
    %156 = vector.broadcast %152 : vector<8x1xf32> to vector<8x8xf32>
    %157 = arith.subf %147, %156 : vector<8x8xf32>
    %158 = math.exp %157 : vector<8x8xf32>
    %cst_61 = arith.constant dense<0.000000e+00> : vector<8xf32>
    %159 = vector.multi_reduction <add>, %155, %cst_61 [1] : vector<8x8xf32> to vector<8xf32>
    %160 = vector.shape_cast %159 : vector<8xf32> to vector<8x1xf32>
    %cst_62 = arith.constant dense<0.000000e+00> : vector<8xf32>
    %161 = vector.multi_reduction <add>, %158, %cst_62 [1] : vector<8x8xf32> to vector<8xf32>
    %162 = vector.shape_cast %161 : vector<8xf32> to vector<8x1xf32>
    %163 = arith.addf %160, %162 : vector<8x1xf32>
    %164 = tpu.reciprocal %163 {approx = true} : vector<8x1xf32> -> vector<8x1xf32>
    %cst_63 = arith.constant dense<0.000000e+00> : vector<8x8xf32>
    %165 = tpu.matmul %155, %144, %cst_63 {dimension_numbers = #tpu.dot_dimension_numbers<[1], [0], [0], [1], [0, 0, 1, 1], [], []>} : vector<8x8xf32>, vector<8x8xf32>, vector<8x8xf32> -> vector<8x8xf32>
    %cst_64 = arith.constant dense<0.000000e+00> : vector<8x8xf32>
    %166 = tpu.matmul %158, %145, %cst_64 {dimension_numbers = #tpu.dot_dimension_numbers<[1], [0], [0], [1], [0, 0, 1, 1], [], []>} : vector<8x8xf32>, vector<8x8xf32>, vector<8x8xf32> -> vector<8x8xf32>
    %167 = arith.addf %165, %166 : vector<8x8xf32>
    %168 = vector.broadcast %164 : vector<8x1xf32> to vector<8x8xf32>
    %169 = arith.mulf %167, %168 : vector<8x8xf32>
    %170 = vector.extract_strided_slice %14 {offsets = [0, 8], sizes = [8, 8], strides = [1, 1]} : vector<8x32xf32> to vector<8x8xf32>
    %171 = vector.extract_strided_slice %140 {offsets = [0, 8], sizes = [8, 8], strides = [1, 1]} : vector<8x32xf32> to vector<8x8xf32>
    %172 = vector.extract_strided_slice %141 {offsets = [0, 8], sizes = [8, 8], strides = [1, 1]} : vector<8x32xf32> to vector<8x8xf32>
    %173 = vector.extract_strided_slice %15 {offsets = [0, 8], sizes = [8, 8], strides = [1, 1]} : vector<8x32xf32> to vector<8x8xf32>
    %cst_65 = arith.constant dense<0.000000e+00> : vector<8x8xf32>
    %174 = tpu.matmul %170, %171, %cst_65 {dimension_numbers = #tpu.dot_dimension_numbers<[1], [1], [0], [0], [0, 0, 1, 0], [], []>} : vector<8x8xf32>, vector<8x8xf32>, vector<8x8xf32> -> vector<8x8xf32>
    %c0_66 = arith.constant 0 : index
    %c8_67 = arith.constant 8 : index
    %175 = vector.load %arg7[%c0_66, %c8_67] : memref<8x32xf32, #tpu.memory_space<vmem>>, vector<8x8xf32>
    %cst_68 = arith.constant dense<0xFF800000> : vector<8xf32>
    %176 = vector.multi_reduction <maximumf>, %174, %cst_68 [1] : vector<8x8xf32> to vector<8xf32>
    %177 = vector.shape_cast %176 : vector<8xf32> to vector<8x1xf32>
    %cst_69 = arith.constant dense<0xFF800000> : vector<8xf32>
    %178 = vector.multi_reduction <maximumf>, %175, %cst_69 [1] : vector<8x8xf32> to vector<8xf32>
    %179 = vector.shape_cast %178 : vector<8xf32> to vector<8x1xf32>
    %180 = arith.maximumf %177, %179 : vector<8x1xf32>
    %181 = vector.broadcast %180 : vector<8x1xf32> to vector<8x8xf32>
    %182 = arith.subf %174, %181 : vector<8x8xf32>
    %183 = math.exp %182 : vector<8x8xf32>
    %184 = vector.broadcast %180 : vector<8x1xf32> to vector<8x8xf32>
    %185 = arith.subf %175, %184 : vector<8x8xf32>
    %186 = math.exp %185 : vector<8x8xf32>
    %cst_70 = arith.constant dense<0.000000e+00> : vector<8xf32>
    %187 = vector.multi_reduction <add>, %183, %cst_70 [1] : vector<8x8xf32> to vector<8xf32>
    %188 = vector.shape_cast %187 : vector<8xf32> to vector<8x1xf32>
    %cst_71 = arith.constant dense<0.000000e+00> : vector<8xf32>
    %189 = vector.multi_reduction <add>, %186, %cst_71 [1] : vector<8x8xf32> to vector<8xf32>
    %190 = vector.shape_cast %189 : vector<8xf32> to vector<8x1xf32>
    %191 = arith.addf %188, %190 : vector<8x1xf32>
    %192 = tpu.reciprocal %191 {approx = true} : vector<8x1xf32> -> vector<8x1xf32>
    %cst_72 = arith.constant dense<0.000000e+00> : vector<8x8xf32>
    %193 = tpu.matmul %183, %172, %cst_72 {dimension_numbers = #tpu.dot_dimension_numbers<[1], [0], [0], [1], [0, 0, 1, 1], [], []>} : vector<8x8xf32>, vector<8x8xf32>, vector<8x8xf32> -> vector<8x8xf32>
    %cst_73 = arith.constant dense<0.000000e+00> : vector<8x8xf32>
    %194 = tpu.matmul %186, %173, %cst_73 {dimension_numbers = #tpu.dot_dimension_numbers<[1], [0], [0], [1], [0, 0, 1, 1], [], []>} : vector<8x8xf32>, vector<8x8xf32>, vector<8x8xf32> -> vector<8x8xf32>
    %195 = arith.addf %193, %194 : vector<8x8xf32>
    %196 = vector.broadcast %192 : vector<8x1xf32> to vector<8x8xf32>
    %197 = arith.mulf %195, %196 : vector<8x8xf32>
    %198 = vector.extract_strided_slice %14 {offsets = [0, 16], sizes = [8, 8], strides = [1, 1]} : vector<8x32xf32> to vector<8x8xf32>
    %199 = vector.extract_strided_slice %140 {offsets = [0, 16], sizes = [8, 8], strides = [1, 1]} : vector<8x32xf32> to vector<8x8xf32>
    %200 = vector.extract_strided_slice %141 {offsets = [0, 16], sizes = [8, 8], strides = [1, 1]} : vector<8x32xf32> to vector<8x8xf32>
    %201 = vector.extract_strided_slice %15 {offsets = [0, 16], sizes = [8, 8], strides = [1, 1]} : vector<8x32xf32> to vector<8x8xf32>
    %cst_74 = arith.constant dense<0.000000e+00> : vector<8x8xf32>
    %202 = tpu.matmul %198, %199, %cst_74 {dimension_numbers = #tpu.dot_dimension_numbers<[1], [1], [0], [0], [0, 0, 1, 0], [], []>} : vector<8x8xf32>, vector<8x8xf32>, vector<8x8xf32> -> vector<8x8xf32>
    %c0_75 = arith.constant 0 : index
    %c16_76 = arith.constant 16 : index
    %203 = vector.load %arg7[%c0_75, %c16_76] : memref<8x32xf32, #tpu.memory_space<vmem>>, vector<8x8xf32>
    %cst_77 = arith.constant dense<0xFF800000> : vector<8xf32>
    %204 = vector.multi_reduction <maximumf>, %202, %cst_77 [1] : vector<8x8xf32> to vector<8xf32>
    %205 = vector.shape_cast %204 : vector<8xf32> to vector<8x1xf32>
    %cst_78 = arith.constant dense<0xFF800000> : vector<8xf32>
    %206 = vector.multi_reduction <maximumf>, %203, %cst_78 [1] : vector<8x8xf32> to vector<8xf32>
    %207 = vector.shape_cast %206 : vector<8xf32> to vector<8x1xf32>
    %208 = arith.maximumf %205, %207 : vector<8x1xf32>
    %209 = vector.broadcast %208 : vector<8x1xf32> to vector<8x8xf32>
    %210 = arith.subf %202, %209 : vector<8x8xf32>
    %211 = math.exp %210 : vector<8x8xf32>
    %212 = vector.broadcast %208 : vector<8x1xf32> to vector<8x8xf32>
    %213 = arith.subf %203, %212 : vector<8x8xf32>
    %214 = math.exp %213 : vector<8x8xf32>
    %cst_79 = arith.constant dense<0.000000e+00> : vector<8xf32>
    %215 = vector.multi_reduction <add>, %211, %cst_79 [1] : vector<8x8xf32> to vector<8xf32>
    %216 = vector.shape_cast %215 : vector<8xf32> to vector<8x1xf32>
    %cst_80 = arith.constant dense<0.000000e+00> : vector<8xf32>
    %217 = vector.multi_reduction <add>, %214, %cst_80 [1] : vector<8x8xf32> to vector<8xf32>
    %218 = vector.shape_cast %217 : vector<8xf32> to vector<8x1xf32>
    %219 = arith.addf %216, %218 : vector<8x1xf32>
    %220 = tpu.reciprocal %219 {approx = true} : vector<8x1xf32> -> vector<8x1xf32>
    %cst_81 = arith.constant dense<0.000000e+00> : vector<8x8xf32>
    %221 = tpu.matmul %211, %200, %cst_81 {dimension_numbers = #tpu.dot_dimension_numbers<[1], [0], [0], [1], [0, 0, 1, 1], [], []>} : vector<8x8xf32>, vector<8x8xf32>, vector<8x8xf32> -> vector<8x8xf32>
    %cst_82 = arith.constant dense<0.000000e+00> : vector<8x8xf32>
    %222 = tpu.matmul %214, %201, %cst_82 {dimension_numbers = #tpu.dot_dimension_numbers<[1], [0], [0], [1], [0, 0, 1, 1], [], []>} : vector<8x8xf32>, vector<8x8xf32>, vector<8x8xf32> -> vector<8x8xf32>
    %223 = arith.addf %221, %222 : vector<8x8xf32>
    %224 = vector.broadcast %220 : vector<8x1xf32> to vector<8x8xf32>
    %225 = arith.mulf %223, %224 : vector<8x8xf32>
    %226 = vector.extract_strided_slice %14 {offsets = [0, 24], sizes = [8, 8], strides = [1, 1]} : vector<8x32xf32> to vector<8x8xf32>
    %227 = vector.extract_strided_slice %140 {offsets = [0, 24], sizes = [8, 8], strides = [1, 1]} : vector<8x32xf32> to vector<8x8xf32>
    %228 = vector.extract_strided_slice %141 {offsets = [0, 24], sizes = [8, 8], strides = [1, 1]} : vector<8x32xf32> to vector<8x8xf32>
    %229 = vector.extract_strided_slice %15 {offsets = [0, 24], sizes = [8, 8], strides = [1, 1]} : vector<8x32xf32> to vector<8x8xf32>
    %cst_83 = arith.constant dense<0.000000e+00> : vector<8x8xf32>
    %230 = tpu.matmul %226, %227, %cst_83 {dimension_numbers = #tpu.dot_dimension_numbers<[1], [1], [0], [0], [0, 0, 1, 0], [], []>} : vector<8x8xf32>, vector<8x8xf32>, vector<8x8xf32> -> vector<8x8xf32>
    %c0_84 = arith.constant 0 : index
    %c24_85 = arith.constant 24 : index
    %231 = vector.load %arg7[%c0_84, %c24_85] : memref<8x32xf32, #tpu.memory_space<vmem>>, vector<8x8xf32>
    %cst_86 = arith.constant dense<0xFF800000> : vector<8xf32>
    %232 = vector.multi_reduction <maximumf>, %230, %cst_86 [1] : vector<8x8xf32> to vector<8xf32>
    %233 = vector.shape_cast %232 : vector<8xf32> to vector<8x1xf32>
    %cst_87 = arith.constant dense<0xFF800000> : vector<8xf32>
    %234 = vector.multi_reduction <maximumf>, %231, %cst_87 [1] : vector<8x8xf32> to vector<8xf32>
    %235 = vector.shape_cast %234 : vector<8xf32> to vector<8x1xf32>
    %236 = arith.maximumf %233, %235 : vector<8x1xf32>
    %237 = vector.broadcast %236 : vector<8x1xf32> to vector<8x8xf32>
    %238 = arith.subf %230, %237 : vector<8x8xf32>
    %239 = math.exp %238 : vector<8x8xf32>
    %240 = vector.broadcast %236 : vector<8x1xf32> to vector<8x8xf32>
    %241 = arith.subf %231, %240 : vector<8x8xf32>
    %242 = math.exp %241 : vector<8x8xf32>
    %cst_88 = arith.constant dense<0.000000e+00> : vector<8xf32>
    %243 = vector.multi_reduction <add>, %239, %cst_88 [1] : vector<8x8xf32> to vector<8xf32>
    %244 = vector.shape_cast %243 : vector<8xf32> to vector<8x1xf32>
    %cst_89 = arith.constant dense<0.000000e+00> : vector<8xf32>
    %245 = vector.multi_reduction <add>, %242, %cst_89 [1] : vector<8x8xf32> to vector<8xf32>
    %246 = vector.shape_cast %245 : vector<8xf32> to vector<8x1xf32>
    %247 = arith.addf %244, %246 : vector<8x1xf32>
    %248 = tpu.reciprocal %247 {approx = true} : vector<8x1xf32> -> vector<8x1xf32>
    %cst_90 = arith.constant dense<0.000000e+00> : vector<8x8xf32>
    %249 = tpu.matmul %239, %228, %cst_90 {dimension_numbers = #tpu.dot_dimension_numbers<[1], [0], [0], [1], [0, 0, 1, 1], [], []>} : vector<8x8xf32>, vector<8x8xf32>, vector<8x8xf32> -> vector<8x8xf32>
    %cst_91 = arith.constant dense<0.000000e+00> : vector<8x8xf32>
    %250 = tpu.matmul %242, %229, %cst_91 {dimension_numbers = #tpu.dot_dimension_numbers<[1], [0], [0], [1], [0, 0, 1, 1], [], []>} : vector<8x8xf32>, vector<8x8xf32>, vector<8x8xf32> -> vector<8x8xf32>
    %251 = arith.addf %249, %250 : vector<8x8xf32>
    %252 = vector.broadcast %248 : vector<8x1xf32> to vector<8x8xf32>
    %253 = arith.mulf %251, %252 : vector<8x8xf32>
    %254 = tpu.concatenate %169, %197, %225, %253 in 1 : vector<8x8xf32>, vector<8x8xf32>, vector<8x8xf32>, vector<8x8xf32> -> vector<8x32xf32>
    %255 = arith.truncf %254 : vector<8x32xf32> to vector<8x32xbf16>
    %cst_92 = arith.constant dense<0.000000e+00> : vector<8x32xf32>
    %256 = tpu.matmul %255, %16, %cst_92 {dimension_numbers = #tpu.dot_dimension_numbers<[1], [0], [0], [1], [0, 0, 1, 1], [], []>} : vector<8x32xbf16>, vector<32x32xbf16>, vector<8x32xf32> -> vector<8x32xf32>
    %257 = vector.broadcast %17 : vector<1x32xf32> to vector<8x32xf32>
    %258 = arith.addf %256, %257 : vector<8x32xf32>
    %c1 = arith.constant 1 : index
    %c0_93 = arith.constant 0 : index
    %c0_94 = arith.constant 0 : index
    %259 = vector.load %arg11[%c1, %c0_93, %c0_94] : memref<2x8x32xf32, #tpu.memory_space<vmem>>, vector<1x8x32xf32>
    %260 = vector.shape_cast %259 : vector<1x8x32xf32> to vector<8x32xf32>
    %261 = vector.shape_cast %258 : vector<8x32xf32> to vector<1x8x32xf32>
    tpu.vector_store %arg11[%c1, %c0_93, %c0_94], %261 {strides = array<i32>} : memref<2x8x32xf32, #tpu.memory_space<vmem>>, vector<1x8x32xf32>,
    return
  }
  func.func @transform_0(%arg0: i32) -> (i32, i32, i32) {
    %c0_i32 = arith.constant 0 : i32
    %c0_i32_0 = arith.constant 0 : i32
    %c0_i32_1 = arith.constant 0 : i32
    return %arg0, %c0_i32, %c0_i32_0 : i32, i32, i32
  }
  func.func @transform_1(%arg0: i32) -> (i32, i32) {
    %c0_i32 = arith.constant 0 : i32
    %c0_i32_0 = arith.constant 0 : i32
    %c0_i32_1 = arith.constant 0 : i32
    return %c0_i32, %c0_i32_0 : i32, i32
  }
  func.func @transform_2(%arg0: i32) -> (i32, i32) {
    %c0_i32 = arith.constant 0 : i32
    %c0_i32_0 = arith.constant 0 : i32
    %c0_i32_1 = arith.constant 0 : i32
    return %c0_i32, %c0_i32_0 : i32, i32
  }
  func.func @transform_3(%arg0: i32) -> (i32, i32) {
    %c0_i32 = arith.constant 0 : i32
    %c0_i32_0 = arith.constant 0 : i32
    %c0_i32_1 = arith.constant 0 : i32
    return %c0_i32, %c0_i32_0 : i32, i32
  }
  func.func @transform_4(%arg0: i32) -> (i32, i32) {
    %c0_i32 = arith.constant 0 : i32
    %c0_i32_0 = arith.constant 0 : i32
    %c0_i32_1 = arith.constant 0 : i32
    return %c0_i32, %c0_i32_0 : i32, i32
  }
  func.func @transform_5(%arg0: i32) -> (i32, i32) {
    %c0_i32 = arith.constant 0 : i32
    %c0_i32_0 = arith.constant 0 : i32
    %c0_i32_1 = arith.constant 0 : i32
    return %c0_i32, %c0_i32_0 : i32, i32
  }
  func.func @transform_6(%arg0: i32) -> (i32, i32) {
    %c0_i32 = arith.constant 0 : i32
    %c0_i32_0 = arith.constant 0 : i32
    %c0_i32_1 = arith.constant 0 : i32
    return %c0_i32, %c0_i32_0 : i32, i32
  }
  func.func @transform_7(%arg0: i32) -> (i32, i32) {
    %c0_i32 = arith.constant 0 : i32
    %c0_i32_0 = arith.constant 0 : i32
    %c0_i32_1 = arith.constant 0 : i32
    return %c0_i32, %c0_i32_0 : i32, i32
  }
  func.func @transform_8(%arg0: i32) -> (i32, i32) {
    %c0_i32 = arith.constant 0 : i32
    %c0_i32_0 = arith.constant 0 : i32
    %c0_i32_1 = arith.constant 0 : i32
    return %c0_i32, %c0_i32_0 : i32, i32
  }
  func.func @transform_9(%arg0: i32) -> (i32, i32) {
    %c0_i32 = arith.constant 0 : i32
    %c0_i32_0 = arith.constant 0 : i32
    %c0_i32_1 = arith.constant 0 : i32
    return %c0_i32, %c0_i32_0 : i32, i32
  }
  func.func @transform_10(%arg0: i32) -> (i32, i32, i32) {
    %c0_i32 = arith.constant 0 : i32
    %c0_i32_0 = arith.constant 0 : i32
    %c0_i32_1 = arith.constant 0 : i32
    return %arg0, %c0_i32, %c0_i32_0 : i32, i32, i32
  }
}

</mosaic_0001>

<llo_original>
// kernel: tpu_custom_call.1
$region0: #{tpu_custom_call.1}
  #allocation0 [shape = 'u32[]', space=smem, size = 0x4, offset = 0x4, fixed_abs, tag = 'smem constant byte address 0x4 - core index']
  #allocation1 [shape = 'u32[144,128]{1,0:T(1,128)}', space=vmem, size = 0x12000, scoped, tag = 'internal scratch']
  %s0 = inlined_call_operand.hbm [shape: f32[1,16,16], index: 0, kind: input, shape index: {}]
  %s1 = inlined_call_operand.hbm [shape: bf16[16,32], index: 1, kind: input, shape index: {}]
  %s2 = inlined_call_operand.vmem [shape: f32[1,32], index: 2, kind: input, shape index: {}]
  %s3 = inlined_call_operand.hbm [shape: bf16[32,64], index: 3, kind: input, shape index: {}]
  %s4 = inlined_call_operand.hbm [shape: f32[1,64], index: 4, kind: input, shape index: {}]
  %s5 = inlined_call_operand.vmem [shape: f32[8,32], index: 5, kind: input, shape index: {}]
  %s6 = inlined_call_operand.hbm [shape: f32[8,32], index: 6, kind: input, shape index: {}]
  %s7 = inlined_call_operand.hbm [shape: f32[8,32], index: 7, kind: input, shape index: {}]
  %s8 = inlined_call_operand.hbm [shape: bf16[32,32], index: 8, kind: input, shape index: {}]
  %s9 = inlined_call_operand.vmem [shape: f32[1,32], index: 9, kind: input, shape index: {}]
  %s10 = inlined_call_operand.hbm [shape: f32[2,8,32], index: 10, kind: output, shape index: {}]
  %s11 = sld [smem:[#allocation0]]
  $region78: #{tpu_custom_call.1} parent=0
    _
  %s13 = ssub.s32 1, %s11
  %s14 = scalar_select 0, %s13, %s11
  $region1: #{tpu_custom_call.1} parent=0
    #allocation2 [shape = 'u8[8192]{0}', space=vmem, size = 0x2000, scoped, tag = 'input window, operand 0, single buffered']
    #allocation3 [shape = 's32[1]{0}', space=sflag, size = 0x4, scoped, tag = 'scoped memory for tpu_custom_call.1']
    #allocation4 [shape = 's32[1]{0}', space=sflag, size = 0x4, scoped, tag = 'scoped memory for tpu_custom_call.1']
    #allocation5 [shape = 'u8[4096]{0}', space=vmem, size = 0x1000, scoped, tag = 'input window, operand 1, single buffered']
    #allocation6 [shape = 's32[1]{0}', space=sflag, size = 0x4, scoped, tag = 'scoped memory for tpu_custom_call.1']
    #allocation7 [shape = 'u8[8192]{0}', space=vmem, size = 0x2000, scoped, tag = 'input window, operand 3, single buffered']
    #allocation8 [shape = 'u8[512]{0}', space=vmem, size = 0x400, scoped, tag = 'input window, operand 4, single buffered']
    #allocation9 [shape = 's32[1]{0}', space=sflag, size = 0x4, scoped, tag = 'scoped memory for tpu_custom_call.1']
    #allocation10 [shape = 'u8[4096]{0}', space=vmem, size = 0x1000, scoped, tag = 'input window, operand 6, single buffered']
    #allocation11 [shape = 'u8[4096]{0}', space=vmem, size = 0x1000, scoped, tag = 'input window, operand 7, single buffered']
    #allocation12 [shape = 's32[1]{0}', space=sflag, size = 0x4, scoped, tag = 'scoped memory for tpu_custom_call.1']
    #allocation13 [shape = 'u8[8192]{0}', space=vmem, size = 0x2000, scoped, tag = 'input window, operand 8, single buffered']
    #allocation14 [shape = 'u8[8192]{0}', space=vmem, size = 0x2000, scoped, tag = 'output window, operand 0, single buffered']
    %15 = vsyncpa [#allocation3], 0
    %16 = vsyncpa [#allocation6], 0
    %17 = vsyncpa [#allocation9], 0
    %18 = vsyncpa [#allocation12], 0
    %19 = vsyncpa [#allocation4], 0
    // Predicated region
    $region2: #{tpu_custom_call.1} parent=1 // pred_check
      _
    $region3: #{tpu_custom_call.1} parent=1 // pred_check_branch
      %21 = sbr.rel (0) target = $region5
    $region4: #{tpu_custom_call.1} parent=1 // pred_region
      %s23 = ssub.s32 256, 256
      %24 = vsyncadd [#allocation3], %s23
      %s25 = sshll.u32 [#allocation2], 4
      %s26 = int_to_ptr.vmem [resolvable:$true] %s25
      %31 = dma.hbm_to_vmem [thread:$0]  %s0, 256, %s26, [#allocation3], 128, 128, 8
    $region5: #{tpu_custom_call.1} parent=1 // pred_fallthru
      _
    // Predicated region
    $region6: #{tpu_custom_call.1} parent=1 // pred_check
      _
    $region7: #{tpu_custom_call.1} parent=1 // pred_check_branch
      %33 = sbr.rel (0) target = $region9
    $region8: #{tpu_custom_call.1} parent=1 // pred_region
      %s35 = ssub.s32 128, 128
      %36 = vsyncadd [#allocation6], %s35
      %s37 = sshll.u32 [#allocation5], 4
      %s38 = int_to_ptr.vmem [resolvable:$true] %s37
      %43 = dma.hbm_to_vmem [thread:$0]  %s1, 128, %s38, [#allocation6], 64, 64, 4
    $region9: #{tpu_custom_call.1} parent=1 // pred_fallthru
      _
    // Predicated region
    $region10: #{tpu_custom_call.1} parent=1 // pred_check
      _
    $region11: #{tpu_custom_call.1} parent=1 // pred_check_branch
      %45 = sbr.rel (0) target = $region13
    $region12: #{tpu_custom_call.1} parent=1 // pred_region
      _
    $region13: #{tpu_custom_call.1} parent=1 // pred_fallthru
      _
    // Predicated region
    $region14: #{tpu_custom_call.1} parent=1 // pred_check
      _
    $region15: #{tpu_custom_call.1} parent=1 // pred_check_branch
      %47 = sbr.rel (0) target = $region17
    $region16: #{tpu_custom_call.1} parent=1 // pred_region
      %s49 = ssub.s32 256, 256
      %50 = vsyncadd [#allocation6], %s49
      %s51 = sshll.u32 [#allocation7], 4
      %s52 = int_to_ptr.vmem [resolvable:$true] %s51
      %57 = dma.hbm_to_vmem [thread:$0]  %s3, 256, %s52, [#allocation6], 64, 64, 4
    $region17: #{tpu_custom_call.1} parent=1 // pred_fallthru
      _
    // Predicated region
    $region18: #{tpu_custom_call.1} parent=1 // pred_check
      _
    $region19: #{tpu_custom_call.1} parent=1 // pred_check_branch
      %59 = sbr.rel (0) target = $region21
    $region20: #{tpu_custom_call.1} parent=1 // pred_region
      %s61 = ssub.s32 16, 16
      %62 = vsyncadd [#allocation9], %s61
      %s64 = sshll.u32 [#allocation8], 4
      %s65 = int_to_ptr.vmem [resolvable:$true] %s64
      %67 = dma.hbm_to_vmem [thread:$0]  %s4, 16, %s65, [#allocation9]
    $region21: #{tpu_custom_call.1} parent=1 // pred_fallthru
      _
    // Predicated region
    $region22: #{tpu_custom_call.1} parent=1 // pred_check
      _
    $region23: #{tpu_custom_call.1} parent=1 // pred_check_branch
      %69 = sbr.rel (0) target = $region25
    $region24: #{tpu_custom_call.1} parent=1 // pred_region
      _
    $region25: #{tpu_custom_call.1} parent=1 // pred_fallthru
      _
    // Predicated region
    $region26: #{tpu_custom_call.1} parent=1 // pred_check
      _
    $region27: #{tpu_custom_call.1} parent=1 // pred_check_branch
      %71 = sbr.rel (0) target = $region29
    $region28: #{tpu_custom_call.1} parent=1 // pred_region
      %s73 = ssub.s32 128, 128
      %74 = vsyncadd [#allocation9], %s73
      %s76 = sshll.u32 [#allocation10], 4
      %s77 = int_to_ptr.vmem [resolvable:$true] %s76
      %79 = dma.hbm_to_vmem [thread:$0]  %s6, 128, %s77, [#allocation9]
    $region29: #{tpu_custom_call.1} parent=1 // pred_fallthru
      _
    // Predicated region
    $region30: #{tpu_custom_call.1} parent=1 // pred_check
      _
    $region31: #{tpu_custom_call.1} parent=1 // pred_check_branch
      %81 = sbr.rel (0) target = $region33
    $region32: #{tpu_custom_call.1} parent=1 // pred_region
      %s83 = ssub.s32 128, 128
      %84 = vsyncadd [#allocation12], %s83
      %s86 = sshll.u32 [#allocation11], 4
      %s87 = int_to_ptr.vmem [resolvable:$true] %s86
      %89 = dma.hbm_to_vmem [thread:$0]  %s7, 128, %s87, [#allocation12]
    $region33: #{tpu_custom_call.1} parent=1 // pred_fallthru
      _
    // Predicated region
    $region34: #{tpu_custom_call.1} parent=1 // pred_check
      _
    $region35: #{tpu_custom_call.1} parent=1 // pred_check_branch
      %91 = sbr.rel (0) target = $region37
    $region36: #{tpu_custom_call.1} parent=1 // pred_region
      %s93 = ssub.s32 256, 256
      %94 = vsyncadd [#allocation12], %s93
      %s95 = sshll.u32 [#allocation13], 4
      %s96 = int_to_ptr.vmem [resolvable:$true] %s95
      %101 = dma.hbm_to_vmem [thread:$0]  %s8, 256, %s96, [#allocation12], 64, 64, 4
    $region37: #{tpu_custom_call.1} parent=1 // pred_fallthru
      _
    // Predicated region
    $region38: #{tpu_custom_call.1} parent=1 // pred_check
      _
    $region39: #{tpu_custom_call.1} parent=1 // pred_check_branch
      %103 = sbr.rel (0) target = $region41
    $region40: #{tpu_custom_call.1} parent=1 // pred_region
      _
    $region41: #{tpu_custom_call.1} parent=1 // pred_fallthru
      _
    // Predicated region
    $region42: #{tpu_custom_call.1} parent=1 // pred_check
      _
    $region43: #{tpu_custom_call.1} parent=1 // pred_check_branch
      %105 = sbr.rel (0) target = $region45
    $region44: #{tpu_custom_call.1} parent=1 // pred_region
      %106 = dma.done [#allocation3], 256
    $region45: #{tpu_custom_call.1} parent=1 // pred_fallthru
      _
    // Predicated region
    $region46: #{tpu_custom_call.1} parent=1 // pred_check
      _
    $region47: #{tpu_custom_call.1} parent=1 // pred_check_branch
      %108 = sbr.rel (0) target = $region49
    $region48: #{tpu_custom_call.1} parent=1 // pred_region
      %109 = dma.done [#allocation6], 128
    $region49: #{tpu_custom_call.1} parent=1 // pred_fallthru
      _
    // Predicated region
    $region50: #{tpu_custom_call.1} parent=1 // pred_check
      _
    $region51: #{tpu_custom_call.1} parent=1 // pred_check_branch
      %111 = sbr.rel (0) target = $region53
    $region52: #{tpu_custom_call.1} parent=1 // pred_region
      %112 = dma.done [#allocation6], 256
    $region53: #{tpu_custom_call.1} parent=1 // pred_fallthru
      _
    // Predicated region
    $region54: #{tpu_custom_call.1} parent=1 // pred_check
      _
    $region55: #{tpu_custom_call.1} parent=1 // pred_check_branch
      %114 = sbr.rel (0) target = $region57
    $region56: #{tpu_custom_call.1} parent=1 // pred_region
      %115 = dma.done [#allocation9], 16
    $region57: #{tpu_custom_call.1} parent=1 // pred_fallthru
      _
    // Predicated region
    $region58: #{tpu_custom_call.1} parent=1 // pred_check
      _
    $region59: #{tpu_custom_call.1} parent=1 // pred_check_branch
      %117 = sbr.rel (0) target = $region61
    $region60: #{tpu_custom_call.1} parent=1 // pred_region
      %118 = dma.done [#allocation9], 128
    $region61: #{tpu_custom_call.1} parent=1 // pred_fallthru
      _
    // Predicated region
    $region62: #{tpu_custom_call.1} parent=1 // pred_check
      _
    $region63: #{tpu_custom_call.1} parent=1 // pred_check_branch
      %120 = sbr.rel (0) target = $region65
    $region64: #{tpu_custom_call.1} parent=1 // pred_region
      %121 = dma.done [#allocation12], 128
    $region65: #{tpu_custom_call.1} parent=1 // pred_fallthru
      _
    // Predicated region
    $region66: #{tpu_custom_call.1} parent=1 // pred_check
      _
    $region67: #{tpu_custom_call.1} parent=1 // pred_check_branch
      %123 = sbr.rel (0) target = $region69
    $region68: #{tpu_custom_call.1} parent=1 // pred_region
      %124 = dma.done [#allocation12], 256
    $region69: #{tpu_custom_call.1} parent=1 // pred_fallthru
      _
    %v126 = vld [vmem:[#allocation2] sm:$0xff]
    %v127 = vld [vmem:[#allocation2 + $0x8] sm:$0xff]
    %v128 = vpack.c.bf16 %v127, %v126
    %v129 = vld [vmem:[#allocation5] sm:$0xf]
    %v130 = vld [vmem:[#allocation5 + $0x4] sm:$0xf]
    %v131 = vld [vmem:[%s2] sm:$0x1]
    %v133 = vlaneseq
    %v134 = vshrl.u32 %v133, 7
    %v135 = vsub.s32 0, %v134
    %v136 = vrot.slane %v131, %v135
    %v140 = vunpack.c.l.b16 %v129
    %v141 = vunpack.c.l.b16 %v130
    %v142 = vpack.c.b16 %v141, %v140
    %vm144 = vcmask 130048
    %v146 = vsel %vm144, %v128, 0
    %148 = vmatprep.subr.bf16.mxu0 0
    %149 = vmatpush1.bf16.msra.mxu0 0
    %150 = vmatprep.subr.bf16.mxu0 0
    %151 = vmatpush1.bf16.msra.mxu0 0
    %152 = vmatprep.subr.bf16.mxu0 0
    %153 = vmatpush1.bf16.msra.mxu0 0
    %154 = vmatprep.subr.bf16.mxu0 0
    %155 = vmatpush1.bf16.msra.mxu0 0
    %156 = vmatprep.subr.bf16.mxu0 0
    %157 = vmatpush1.bf16.msra.mxu0 0
    %158 = vmatprep.subr.bf16.mxu0 0
    %159 = vmatpush1.bf16.msra.mxu0 0
    %160 = vmatprep.subr.bf16.mxu0 0
    %161 = vmatpush1.bf16.msra.mxu0 0
    %162 = vmatprep.subr.bf16.mxu0 0
    %163 = vmatpush1.bf16.msra.mxu0 %v142
    %164 = vmatprep.subr.bf16.mxu0 0
    %165 = vmatpush2.bf16.msra.mxu0 0
    %166 = vmatprep.subr.bf16.mxu0 0
    %167 = vmatpush2.bf16.msra.mxu0 0
    %168 = vmatprep.subr.bf16.mxu0 0
    %169 = vmatpush2.bf16.msra.mxu0 0
    %170 = vmatprep.subr.bf16.mxu0 0
    %171 = vmatpush2.bf16.msra.mxu0 0
    %172 = vmatprep.subr.bf16.mxu0 0
    %173 = vmatpush2.bf16.msra.mxu0 0
    %174 = vmatprep.subr.bf16.mxu0 0
    %175 = vmatpush2.bf16.msra.mxu0 0
    %176 = vmatprep.subr.bf16.mxu0 0
    %177 = vmatpush2.bf16.msra.mxu0 0
    %178 = vmatprep.subr.bf16.mxu0 0
    %179 = vmatpush2.bf16.msra.mxu0 0
    %180 = vmatprep.mubr.bf16.mxu0 0
    %181 = vmatmul.mubr.bf16.gmra.mxu0 %v146
    %v182 = vpop.f32.mrf.mxu0
    %v183 = vadd.f32 %v136, %v182
    %v184 = vpop.f32.mrf.mxu0
    %v185 = vpop.f32.mrf.mxu0
    %v186 = vadd.f32 %v136, %v185
    %v187 = vpop.f32.mrf.mxu0
    %188 = vdwg.mxu0
    %v189 = vpack.c.bf16 %v186, %v183
    %v190 = vld [vmem:[#allocation7] sm:$0xf]
    %v191 = vld [vmem:[#allocation7 + $0x4] sm:$0xf]
    %v192 = vld [vmem:[#allocation7 + $0x8] sm:$0xf]
    %v193 = vld [vmem:[#allocation7 + $0xc] sm:$0xf]
    %v194 = vld [vmem:[#allocation8] sm:$0x1]
    %v196 = vlaneseq
    %v197 = vshrl.u32 %v196, 7
    %v198 = vsub.s32 0, %v197
    %v199 = vrot.slane %v194, %v198
    %v205 = vunpack.c.l.b16 %v190
    %v206 = vunpack.c.l.b16 %v191
    %v207 = vunpack.c.l.b16 %v192
    %v208 = vunpack.c.l.b16 %v193
    %v209 = vpack.c.b16 %v206, %v205
    %v210 = vpack.c.b16 %v208, %v207
    %vm213 = vcmask 261120
    %v215 = vsel %vm213, %v189, 0
    %217 = vmatprep.subr.bf16.mxu0 0
    %218 = vmatpush1.bf16.msra.mxu0 0
    %219 = vmatprep.subr.bf16.mxu0 0
    %220 = vmatpush1.bf16.msra.mxu0 0
    %221 = vmatprep.subr.bf16.mxu0 0
    %222 = vmatpush1.bf16.msra.mxu0 0
    %223 = vmatprep.subr.bf16.mxu0 0
    %224 = vmatpush1.bf16.msra.mxu0 0
    %225 = vmatprep.subr.bf16.mxu0 0
    %226 = vmatpush1.bf16.msra.mxu0 0
    %227 = vmatprep.subr.bf16.mxu0 0
    %228 = vmatpush1.bf16.msra.mxu0 0
    %229 = vmatprep.subr.bf16.mxu0 0
    %230 = vmatpush1.bf16.msra.mxu0 %v210
    %231 = vmatprep.subr.bf16.mxu0 0
    %232 = vmatpush1.bf16.msra.mxu0 %v209
    %233 = vmatprep.subr.bf16.mxu0 0
    %234 = vmatpush2.bf16.msra.mxu0 0
    %235 = vmatprep.subr.bf16.mxu0 0
    %236 = vmatpush2.bf16.msra.mxu0 0
    %237 = vmatprep.subr.bf16.mxu0 0
    %238 = vmatpush2.bf16.msra.mxu0 0
    %239 = vmatprep.subr.bf16.mxu0 0
    %240 = vmatpush2.bf16.msra.mxu0 0
    %241 = vmatprep.subr.bf16.mxu0 0
    %242 = vmatpush2.bf16.msra.mxu0 0
    %243 = vmatprep.subr.bf16.mxu0 0
    %244 = vmatpush2.bf16.msra.mxu0 0
    %245 = vmatprep.subr.bf16.mxu0 0
    %246 = vmatpush2.bf16.msra.mxu0 0
    %247 = vmatprep.subr.bf16.mxu0 0
    %248 = vmatpush2.bf16.msra.mxu0 0
    %249 = vmatprep.mubr.bf16.mxu0 0
    %250 = vmatmul.mubr.bf16.gmra.mxu0 %v215
    %v251 = vpop.f32.mrf.mxu0
    %v252 = vadd.f32 %v199, %v251
    %v253 = vpop.f32.mrf.mxu0
    %v254 = vpop.f32.mrf.mxu0
    %v255 = vadd.f32 %v199, %v254
    %v256 = vpop.f32.mrf.mxu0
    %257 = vdwg.mxu0
    %v258 = vld [vmem:[%s5] sm:$0xff]
    %v259 = vld [vmem:[#allocation11] sm:$0xff]
    %v260 = vld [vmem:[#allocation13] sm:$0xf]
    %v261 = vld [vmem:[#allocation13 + $0x4] sm:$0xf]
    %v262 = vld [vmem:[#allocation13 + $0x8] sm:$0xf]
    %v263 = vld [vmem:[#allocation13 + $0xc] sm:$0xf]
    %v264 = vld [vmem:[%s9] sm:$0x1]
    %vm265 = vcmask 64512
    %v267 = vsel %vm265, %v258, 0
    %v270 = vsel %vm265, %v252, 0
    %272 = vmatprep.subr.mxu0 0.0
    %273 = vmatpush1.xpose.msra.mxu0 0.0
    %274 = vmatprep.subr.mxu0 0.0
    %275 = vmatpush1.xpose.msra.mxu0 0.0
    %276 = vmatprep.subr.mxu0 0.0
    %277 = vmatpush1.xpose.msra.mxu0 0.0
    %278 = vmatprep.subr.mxu0 0.0
    %279 = vmatpush1.xpose.msra.mxu0 0.0
    %280 = vmatprep.subr.mxu0 0.0
    %281 = vmatpush1.xpose.msra.mxu0 0.0
    %282 = vmatprep.subr.mxu0 0.0
    %283 = vmatpush1.xpose.msra.mxu0 0.0
    %284 = vmatprep.subr.mxu0 0.0
    %285 = vmatpush1.xpose.msra.mxu0 0.0
    %286 = vmatprep.subr.mxu0 0.0
    %287 = vmatpush1.xpose.msra.mxu0 0.0
    %288 = vmatprep.subr.mxu0 0.0
    %289 = vmatpush1.xpose.msra.mxu0 0.0
    %290 = vmatprep.subr.mxu0 0.0
    %291 = vmatpush1.xpose.msra.mxu0 0.0
    %292 = vmatprep.subr.mxu0 0.0
    %293 = vmatpush1.xpose.msra.mxu0 0.0
    %294 = vmatprep.subr.mxu0 0.0
    %295 = vmatpush1.xpose.msra.mxu0 0.0
    %296 = vmatprep.subr.mxu0 0.0
    %297 = vmatpush1.xpose.msra.mxu0 0.0
    %298 = vmatprep.subr.mxu0 0.0
    %299 = vmatpush1.xpose.msra.mxu0 0.0
    %300 = vmatprep.subr.mxu0 0.0
    %301 = vmatpush1.xpose.msra.mxu0 0.0
    %302 = vmatprep.subr.mxu0 0.0
    %303 = vmatpush1.xpose.msra.mxu0 %v270
    %304 = vmatprep.subr.mxu0 0.0
    %305 = vmatpush2.xpose.msra.mxu0 0.0
    %306 = vmatprep.subr.mxu0 0.0
    %307 = vmatpush2.xpose.msra.mxu0 0.0
    %308 = vmatprep.subr.mxu0 0.0
    %309 = vmatpush2.xpose.msra.mxu0 0.0
    %310 = vmatprep.subr.mxu0 0.0
    %311 = vmatpush2.xpose.msra.mxu0 0.0
    %312 = vmatprep.subr.mxu0 0.0
    %313 = vmatpush2.xpose.msra.mxu0 0.0
    %314 = vmatprep.subr.mxu0 0.0
    %315 = vmatpush2.xpose.msra.mxu0 0.0
    %316 = vmatprep.subr.mxu0 0.0
    %317 = vmatpush2.xpose.msra.mxu0 0.0
    %318 = vmatprep.subr.mxu0 0.0
    %319 = vmatpush2.xpose.msra.mxu0 0.0
    %320 = vmatprep.subr.mxu0 0.0
    %321 = vmatpush2.xpose.msra.mxu0 0.0
    %322 = vmatprep.subr.mxu0 0.0
    %323 = vmatpush2.xpose.msra.mxu0 0.0
    %324 = vmatprep.subr.mxu0 0.0
    %325 = vmatpush2.xpose.msra.mxu0 0.0
    %326 = vmatprep.subr.mxu0 0.0
    %327 = vmatpush2.xpose.msra.mxu0 0.0
    %328 = vmatprep.subr.mxu0 0.0
    %329 = vmatpush2.xpose.msra.mxu0 0.0
    %330 = vmatprep.subr.mxu0 0.0
    %331 = vmatpush2.xpose.msra.mxu0 0.0
    %332 = vmatprep.subr.mxu0 0.0
    %333 = vmatpush2.xpose.msra.mxu0 0.0
    %334 = vmatprep.subr.mxu0 0.0
    %335 = vmatpush2.xpose.msra.mxu0 0.0
    %336 = vmatprep.mubr.f32.mxu0 0.0
    %337 = vmatmul.mubr.f32.gmra.mxu0 %v267
    %v338 = vpop.f32.mrf.mxu0
    %v339 = vadd.f32 0.0, %v338
    %v340 = vpop.f32.mrf.mxu0
    %341 = vdwg.mxu0
    %v342 = vld [vmem:[#allocation10] sm:$0xff]
    %v343 = vsel %vm265, %v339, -inf
    %344 = vmax.xlane.f32.xlu0 %v343
    %v345 = vpop.xlane.xlu0 %344
    %v346 = vsel %vm265, %v342, -inf
    %347 = vmax.xlane.f32.xlu0 %v346
    %v348 = vpop.xlane.xlu0 %347
    %v349 = vmax.f32 %v345, %v348
    %v350 = vsub.f32 %v339, %v349
    %v351 = vmul.f32 %v350, 1.442695
    %v352 = vpow.pop %v351
    %v353 = vsub.f32 %v342, %v349
    %v354 = vmul.f32 %v353, 1.442695
    %v355 = vpow.pop %v354
    %v356 = vsel %vm265, %v352, 0.0
    %357 = vadd.xlane.f32.xlu0 %v356
    %v358 = vpop.xlane.xlu0 %357
    %v359 = vsel %vm265, %v355, 0.0
    %360 = vadd.xlane.f32.xlu0 %v359
    %v361 = vpop.xlane.xlu0 %360
    %v362 = vadd.f32 %v358, %v361
    %v363 = vrcp.pop %v362
    %v365 = vsel %vm265, %v355, 0
    %367 = vmatprep.subr.mxu0 0.0
    %368 = vmatpush1.msra.mxu0 0.0
    %369 = vmatprep.subr.mxu0 0.0
    %370 = vmatpush1.msra.mxu0 0.0
    %371 = vmatprep.subr.mxu0 0.0
    %372 = vmatpush1.msra.mxu0 0.0
    %373 = vmatprep.subr.mxu0 0.0
    %374 = vmatpush1.msra.mxu0 0.0
    %375 = vmatprep.subr.mxu0 0.0
    %376 = vmatpush1.msra.mxu0 0.0
    %377 = vmatprep.subr.mxu0 0.0
    %378 = vmatpush1.msra.mxu0 0.0
    %379 = vmatprep.subr.mxu0 0.0
    %380 = vmatpush1.msra.mxu0 0.0
    %381 = vmatprep.subr.mxu0 0.0
    %382 = vmatpush1.msra.mxu0 0.0
    %383 = vmatprep.subr.mxu0 0.0
    %384 = vmatpush1.msra.mxu0 0.0
    %385 = vmatprep.subr.mxu0 0.0
    %386 = vmatpush1.msra.mxu0 0.0
    %387 = vmatprep.subr.mxu0 0.0
    %388 = vmatpush1.msra.mxu0 0.0
    %389 = vmatprep.subr.mxu0 0.0
    %390 = vmatpush1.msra.mxu0 0.0
    %391 = vmatprep.subr.mxu0 0.0
    %392 = vmatpush1.msra.mxu0 0.0
    %393 = vmatprep.subr.mxu0 0.0
    %394 = vmatpush1.msra.mxu0 0.0
    %395 = vmatprep.subr.mxu0 0.0
    %396 = vmatpush1.msra.mxu0 0.0
    %397 = vmatprep.subr.mxu0 0.0
    %398 = vmatpush1.msra.mxu0 %v259
    %399 = vmatprep.subr.mxu0 0.0
    %400 = vmatpush2.msra.mxu0 0.0
    %401 = vmatprep.subr.mxu0 0.0
    %402 = vmatpush2.msra.mxu0 0.0
    %403 = vmatprep.subr.mxu0 0.0
    %404 = vmatpush2.msra.mxu0 0.0
    %405 = vmatprep.subr.mxu0 0.0
    %406 = vmatpush2.msra.mxu0 0.0
    %407 = vmatprep.subr.mxu0 0.0
    %408 = vmatpush2.msra.mxu0 0.0
    %409 = vmatprep.subr.mxu0 0.0
    %410 = vmatpush2.msra.mxu0 0.0
    %411 = vmatprep.subr.mxu0 0.0
    %412 = vmatpush2.msra.mxu0 0.0
    %413 = vmatprep.subr.mxu0 0.0
    %414 = vmatpush2.msra.mxu0 0.0
    %415 = vmatprep.subr.mxu0 0.0
    %416 = vmatpush2.msra.mxu0 0.0
    %417 = vmatprep.subr.mxu0 0.0
    %418 = vmatpush2.msra.mxu0 0.0
    %419 = vmatprep.subr.mxu0 0.0
    %420 = vmatpush2.msra.mxu0 0.0
    %421 = vmatprep.subr.mxu0 0.0
    %422 = vmatpush2.msra.mxu0 0.0
    %423 = vmatprep.subr.mxu0 0.0
    %424 = vmatpush2.msra.mxu0 0.0
    %425 = vmatprep.subr.mxu0 0.0
    %426 = vmatpush2.msra.mxu0 0.0
    %427 = vmatprep.subr.mxu0 0.0
    %428 = vmatpush2.msra.mxu0 0.0
    %429 = vmatprep.subr.mxu0 0.0
    %430 = vmatpush2.msra.mxu0 0.0
    %431 = vmatprep.mubr.f32.mxu0 0.0
    %432 = vmatmul.mubr.f32.gmra.mxu0 %v365
    %v433 = vpop.f32.mrf.mxu0
    %v434 = vadd.f32 0.0, %v433
    %v435 = vpop.f32.mrf.mxu0
    %436 = vdwg.mxu0
    %437 = vrot.lane.b32.xlu0 %v252, 96
    %v438 = vpop.permute.xlu0 %437
    %v441 = vsel %vm265, %v352, 0
    %443 = vmatprep.subr.mxu0 0.0
    %444 = vmatpush1.msra.mxu0 0.0
    %445 = vmatprep.subr.mxu0 0.0
    %446 = vmatpush1.msra.mxu0 0.0
    %447 = vmatprep.subr.mxu0 0.0
    %448 = vmatpush1.msra.mxu0 0.0
    %449 = vmatprep.subr.mxu0 0.0
    %450 = vmatpush1.msra.mxu0 0.0
    %451 = vmatprep.subr.mxu0 0.0
    %452 = vmatpush1.msra.mxu0 0.0
    %453 = vmatprep.subr.mxu0 0.0
    %454 = vmatpush1.msra.mxu0 0.0
    %455 = vmatprep.subr.mxu0 0.0
    %456 = vmatpush1.msra.mxu0 0.0
    %457 = vmatprep.subr.mxu0 0.0
    %458 = vmatpush1.msra.mxu0 0.0
    %459 = vmatprep.subr.mxu0 0.0
    %460 = vmatpush1.msra.mxu0 0.0
    %461 = vmatprep.subr.mxu0 0.0
    %462 = vmatpush1.msra.mxu0 0.0
    %463 = vmatprep.subr.mxu0 0.0
    %464 = vmatpush1.msra.mxu0 0.0
    %465 = vmatprep.subr.mxu0 0.0
    %466 = vmatpush1.msra.mxu0 0.0
    %467 = vmatprep.subr.mxu0 0.0
    %468 = vmatpush1.msra.mxu0 0.0
    %469 = vmatprep.subr.mxu0 0.0
    %470 = vmatpush1.msra.mxu0 0.0
    %471 = vmatprep.subr.mxu0 0.0
    %472 = vmatpush1.msra.mxu0 0.0
    %473 = vmatprep.subr.mxu0 0.0
    %474 = vmatpush1.msra.mxu0 %v438
    %475 = vmatprep.subr.mxu0 0.0
    %476 = vmatpush2.msra.mxu0 0.0
    %477 = vmatprep.subr.mxu0 0.0
    %478 = vmatpush2.msra.mxu0 0.0
    %479 = vmatprep.subr.mxu0 0.0
    %480 = vmatpush2.msra.mxu0 0.0
    %481 = vmatprep.subr.mxu0 0.0
    %482 = vmatpush2.msra.mxu0 0.0
    %483 = vmatprep.subr.mxu0 0.0
    %484 = vmatpush2.msra.mxu0 0.0
    %485 = vmatprep.subr.mxu0 0.0
    %486 = vmatpush2.msra.mxu0 0.0
    %487 = vmatprep.subr.mxu0 0.0
    %488 = vmatpush2.msra.mxu0 0.0
    %489 = vmatprep.subr.mxu0 0.0
    %490 = vmatpush2.msra.mxu0 0.0
    %491 = vmatprep.subr.mxu0 0.0
    %492 = vmatpush2.msra.mxu0 0.0
    %493 = vmatprep.subr.mxu0 0.0
    %494 = vmatpush2.msra.mxu0 0.0
    %495 = vmatprep.subr.mxu0 0.0
    %496 = vmatpush2.msra.mxu0 0.0
    %497 = vmatprep.subr.mxu0 0.0
    %498 = vmatpush2.msra.mxu0 0.0
    %499 = vmatprep.subr.mxu0 0.0
    %500 = vmatpush2.msra.mxu0 0.0
    %501 = vmatprep.subr.mxu0 0.0
    %502 = vmatpush2.msra.mxu0 0.0
    %503 = vmatprep.subr.mxu0 0.0
    %504 = vmatpush2.msra.mxu0 0.0
    %505 = vmatprep.subr.mxu0 0.0
    %506 = vmatpush2.msra.mxu0 0.0
    %507 = vmatprep.mubr.f32.mxu0 0.0
    %508 = vmatmul.mubr.f32.gmra.mxu0 %v441
    %v509 = vpop.f32.mrf.mxu0
    %v510 = vadd.f32 %v434, %v509
    %v511 = vpop.f32.mrf.mxu0
    %512 = vdwg.mxu0
    %v513 = vmul.f32 %v510, %v363
    %514 = vrot.lane.b32.xlu0 %v258, 120
    %v515 = vpop.permute.xlu0 %514
    %516 = vrot.lane.b32.xlu0 %v252, 120
    %v517 = vpop.permute.xlu0 %516
    %v518 = vsel %vm265, %v515, 0
    %v520 = vsel %vm265, %v517, 0
    %522 = vmatprep.subr.mxu0 0.0
    %523 = vmatpush1.xpose.msra.mxu0 0.0
    %524 = vmatprep.subr.mxu0 0.0
    %525 = vmatpush1.xpose.msra.mxu0 0.0
    %526 = vmatprep.subr.mxu0 0.0
    %527 = vmatpush1.xpose.msra.mxu0 0.0
    %528 = vmatprep.subr.mxu0 0.0
    %529 = vmatpush1.xpose.msra.mxu0 0.0
    %530 = vmatprep.subr.mxu0 0.0
    %531 = vmatpush1.xpose.msra.mxu0 0.0
    %532 = vmatprep.subr.mxu0 0.0
    %533 = vmatpush1.xpose.msra.mxu0 0.0
    %534 = vmatprep.subr.mxu0 0.0
    %535 = vmatpush1.xpose.msra.mxu0 0.0
    %536 = vmatprep.subr.mxu0 0.0
    %537 = vmatpush1.xpose.msra.mxu0 0.0
    %538 = vmatprep.subr.mxu0 0.0
    %539 = vmatpush1.xpose.msra.mxu0 0.0
    %540 = vmatprep.subr.mxu0 0.0
    %541 = vmatpush1.xpose.msra.mxu0 0.0
    %542 = vmatprep.subr.mxu0 0.0
    %543 = vmatpush1.xpose.msra.mxu0 0.0
    %544 = vmatprep.subr.mxu0 0.0
    %545 = vmatpush1.xpose.msra.mxu0 0.0
    %546 = vmatprep.subr.mxu0 0.0
    %547 = vmatpush1.xpose.msra.mxu0 0.0
    %548 = vmatprep.subr.mxu0 0.0
    %549 = vmatpush1.xpose.msra.mxu0 0.0
    %550 = vmatprep.subr.mxu0 0.0
    %551 = vmatpush1.xpose.msra.mxu0 0.0
    %552 = vmatprep.subr.mxu0 0.0
    %553 = vmatpush1.xpose.msra.mxu0 %v520
    %554 = vmatprep.subr.mxu0 0.0
    %555 = vmatpush2.xpose.msra.mxu0 0.0
    %556 = vmatprep.subr.mxu0 0.0
    %557 = vmatpush2.xpose.msra.mxu0 0.0
    %558 = vmatprep.subr.mxu0 0.0
    %559 = vmatpush2.xpose.msra.mxu0 0.0
    %560 = vmatprep.subr.mxu0 0.0
    %561 = vmatpush2.xpose.msra.mxu0 0.0
    %562 = vmatprep.subr.mxu0 0.0
    %563 = vmatpush2.xpose.msra.mxu0 0.0
    %564 = vmatprep.subr.mxu0 0.0
    %565 = vmatpush2.xpose.msra.mxu0 0.0
    %566 = vmatprep.subr.mxu0 0.0
    %567 = vmatpush2.xpose.msra.mxu0 0.0
    %568 = vmatprep.subr.mxu0 0.0
    %569 = vmatpush2.xpose.msra.mxu0 0.0
    %570 = vmatprep.subr.mxu0 0.0
    %571 = vmatpush2.xpose.msra.mxu0 0.0
    %572 = vmatprep.subr.mxu0 0.0
    %573 = vmatpush2.xpose.msra.mxu0 0.0
    %574 = vmatprep.subr.mxu0 0.0
    %575 = vmatpush2.xpose.msra.mxu0 0.0
    %576 = vmatprep.subr.mxu0 0.0
    %577 = vmatpush2.xpose.msra.mxu0 0.0
    %578 = vmatprep.subr.mxu0 0.0
    %579 = vmatpush2.xpose.msra.mxu0 0.0
    %580 = vmatprep.subr.mxu0 0.0
    %581 = vmatpush2.xpose.msra.mxu0 0.0
    %582 = vmatprep.subr.mxu0 0.0
    %583 = vmatpush2.xpose.msra.mxu0 0.0
    %584 = vmatprep.subr.mxu0 0.0
    %585 = vmatpush2.xpose.msra.mxu0 0.0
    %586 = vmatprep.mubr.f32.mxu0 0.0
    %587 = vmatmul.mubr.f32.gmra.mxu0 %v518
    %v588 = vpop.f32.mrf.mxu0
    %v589 = vadd.f32 0.0, %v588
    %v590 = vpop.f32.mrf.mxu0
    %591 = vdwg.mxu0
    %v592 = vsel %vm265, %v589, -inf
    %593 = vmax.xlane.f32.xlu0 %v592
    %v594 = vpop.xlane.xlu0 %593
    %vm595 = vcmask 130112
    %v596 = vsel %vm595, %v342, -inf
    %597 = vmax.xlane.f32.xlu0 %v596
    %v598 = vpop.xlane.xlu0 %597
    %v599 = vmax.f32 %v594, %v598
    %v600 = vsub.f32 %v589, %v599
    %v601 = vmul.f32 %v600, 1.442695
    %v602 = vpow.pop %v601
    %v603 = vsub.f32 %v342, %v599
    %v604 = vmul.f32 %v603, 1.442695
    %v605 = vpow.pop %v604
    %v606 = vsel %vm265, %v602, 0.0
    %607 = vadd.xlane.f32.xlu0 %v606
    %v608 = vpop.xlane.xlu0 %607
    %610 = vrot.lane.b32.xlu0 %v605, 120
    %v611 = vpop.permute.xlu0 %610
    %v613 = vsel %vm265, %v611, 0.0
    %614 = vadd.xlane.f32.xlu0 %v613
    %v615 = vpop.xlane.xlu0 %614
    %v616 = vadd.f32 %v608, %v615
    %v617 = vrcp.pop %v616
    %619 = vrot.lane.b32.xlu0 %v259, 120
    %v620 = vpop.permute.xlu0 %619
    %v622 = vsel %vm265, %v611, 0
    %624 = vmatprep.subr.mxu0 0.0
    %625 = vmatpush1.msra.mxu0 0.0
    %626 = vmatprep.subr.mxu0 0.0
    %627 = vmatpush1.msra.mxu0 0.0
    %628 = vmatprep.subr.mxu0 0.0
    %629 = vmatpush1.msra.mxu0 0.0
    %630 = vmatprep.subr.mxu0 0.0
    %631 = vmatpush1.msra.mxu0 0.0
    %632 = vmatprep.subr.mxu0 0.0
    %633 = vmatpush1.msra.mxu0 0.0
    %634 = vmatprep.subr.mxu0 0.0
    %635 = vmatpush1.msra.mxu0 0.0
    %636 = vmatprep.subr.mxu0 0.0
    %637 = vmatpush1.msra.mxu0 0.0
    %638 = vmatprep.subr.mxu0 0.0
    %639 = vmatpush1.msra.mxu0 0.0
    %640 = vmatprep.subr.mxu0 0.0
    %641 = vmatpush1.msra.mxu0 0.0
    %642 = vmatprep.subr.mxu0 0.0
    %643 = vmatpush1.msra.mxu0 0.0
    %644 = vmatprep.subr.mxu0 0.0
    %645 = vmatpush1.msra.mxu0 0.0
    %646 = vmatprep.subr.mxu0 0.0
    %647 = vmatpush1.msra.mxu0 0.0
    %648 = vmatprep.subr.mxu0 0.0
    %649 = vmatpush1.msra.mxu0 0.0
    %650 = vmatprep.subr.mxu0 0.0
    %651 = vmatpush1.msra.mxu0 0.0
    %652 = vmatprep.subr.mxu0 0.0
    %653 = vmatpush1.msra.mxu0 0.0
    %654 = vmatprep.subr.mxu0 0.0
    %655 = vmatpush1.msra.mxu0 %v620
    %656 = vmatprep.subr.mxu0 0.0
    %657 = vmatpush2.msra.mxu0 0.0
    %658 = vmatprep.subr.mxu0 0.0
    %659 = vmatpush2.msra.mxu0 0.0
    %660 = vmatprep.subr.mxu0 0.0
    %661 = vmatpush2.msra.mxu0 0.0
    %662 = vmatprep.subr.mxu0 0.0
    %663 = vmatpush2.msra.mxu0 0.0
    %664 = vmatprep.subr.mxu0 0.0
    %665 = vmatpush2.msra.mxu0 0.0
    %666 = vmatprep.subr.mxu0 0.0
    %667 = vmatpush2.msra.mxu0 0.0
    %668 = vmatprep.subr.mxu0 0.0
    %669 = vmatpush2.msra.mxu0 0.0
    %670 = vmatprep.subr.mxu0 0.0
    %671 = vmatpush2.msra.mxu0 0.0
    %672 = vmatprep.subr.mxu0 0.0
    %673 = vmatpush2.msra.mxu0 0.0
    %674 = vmatprep.subr.mxu0 0.0
    %675 = vmatpush2.msra.mxu0 0.0
    %676 = vmatprep.subr.mxu0 0.0
    %677 = vmatpush2.msra.mxu0 0.0
    %678 = vmatprep.subr.mxu0 0.0
    %679 = vmatpush2.msra.mxu0 0.0
    %680 = vmatprep.subr.mxu0 0.0
    %681 = vmatpush2.msra.mxu0 0.0
    %682 = vmatprep.subr.mxu0 0.0
    %683 = vmatpush2.msra.mxu0 0.0
    %684 = vmatprep.subr.mxu0 0.0
    %685 = vmatpush2.msra.mxu0 0.0
    %686 = vmatprep.subr.mxu0 0.0
    %687 = vmatpush2.msra.mxu0 0.0
    %688 = vmatprep.mubr.f32.mxu0 0.0
    %689 = vmatmul.mubr.f32.gmra.mxu0 %v622
    %v690 = vpop.f32.mrf.mxu0
    %v691 = vadd.f32 0.0, %v690
    %v692 = vpop.f32.mrf.mxu0
    %693 = vdwg.mxu0
    %694 = vrot.lane.b32.xlu0 %v252, 88
    %v695 = vpop.permute.xlu0 %694
    %v698 = vsel %vm265, %v602, 0
    %700 = vmatprep.subr.mxu0 0.0
    %701 = vmatpush1.msra.mxu0 0.0
    %702 = vmatprep.subr.mxu0 0.0
    %703 = vmatpush1.msra.mxu0 0.0
    %704 = vmatprep.subr.mxu0 0.0
    %705 = vmatpush1.msra.mxu0 0.0
    %706 = vmatprep.subr.mxu0 0.0
    %707 = vmatpush1.msra.mxu0 0.0
    %708 = vmatprep.subr.mxu0 0.0
    %709 = vmatpush1.msra.mxu0 0.0
    %710 = vmatprep.subr.mxu0 0.0
    %711 = vmatpush1.msra.mxu0 0.0
    %712 = vmatprep.subr.mxu0 0.0
    %713 = vmatpush1.msra.mxu0 0.0
    %714 = vmatprep.subr.mxu0 0.0
    %715 = vmatpush1.msra.mxu0 0.0
    %716 = vmatprep.subr.mxu0 0.0
    %717 = vmatpush1.msra.mxu0 0.0
    %718 = vmatprep.subr.mxu0 0.0
    %719 = vmatpush1.msra.mxu0 0.0
    %720 = vmatprep.subr.mxu0 0.0
    %721 = vmatpush1.msra.mxu0 0.0
    %722 = vmatprep.subr.mxu0 0.0
    %723 = vmatpush1.msra.mxu0 0.0
    %724 = vmatprep.subr.mxu0 0.0
    %725 = vmatpush1.msra.mxu0 0.0
    %726 = vmatprep.subr.mxu0 0.0
    %727 = vmatpush1.msra.mxu0 0.0
    %728 = vmatprep.subr.mxu0 0.0
    %729 = vmatpush1.msra.mxu0 0.0
    %730 = vmatprep.subr.mxu0 0.0
    %731 = vmatpush1.msra.mxu0 %v695
    %732 = vmatprep.subr.mxu0 0.0
    %733 = vmatpush2.msra.mxu0 0.0
    %734 = vmatprep.subr.mxu0 0.0
    %735 = vmatpush2.msra.mxu0 0.0
    %736 = vmatprep.subr.mxu0 0.0
    %737 = vmatpush2.msra.mxu0 0.0
    %738 = vmatprep.subr.mxu0 0.0
    %739 = vmatpush2.msra.mxu0 0.0
    %740 = vmatprep.subr.mxu0 0.0
    %741 = vmatpush2.msra.mxu0 0.0
    %742 = vmatprep.subr.mxu0 0.0
    %743 = vmatpush2.msra.mxu0 0.0
    %744 = vmatprep.subr.mxu0 0.0
    %745 = vmatpush2.msra.mxu0 0.0
    %746 = vmatprep.subr.mxu0 0.0
    %747 = vmatpush2.msra.mxu0 0.0
    %748 = vmatprep.subr.mxu0 0.0
    %749 = vmatpush2.msra.mxu0 0.0
    %750 = vmatprep.subr.mxu0 0.0
    %751 = vmatpush2.msra.mxu0 0.0
    %752 = vmatprep.subr.mxu0 0.0
    %753 = vmatpush2.msra.mxu0 0.0
    %754 = vmatprep.subr.mxu0 0.0
    %755 = vmatpush2.msra.mxu0 0.0
    %756 = vmatprep.subr.mxu0 0.0
    %757 = vmatpush2.msra.mxu0 0.0
    %758 = vmatprep.subr.mxu0 0.0
    %759 = vmatpush2.msra.mxu0 0.0
    %760 = vmatprep.subr.mxu0 0.0
    %761 = vmatpush2.msra.mxu0 0.0
    %762 = vmatprep.subr.mxu0 0.0
    %763 = vmatpush2.msra.mxu0 0.0
    %764 = vmatprep.mubr.f32.mxu0 0.0
    %765 = vmatmul.mubr.f32.gmra.mxu0 %v698
    %v766 = vpop.f32.mrf.mxu0
    %v767 = vadd.f32 %v691, %v766
    %v768 = vpop.f32.mrf.mxu0
    %769 = vdwg.mxu0
    %v770 = vmul.f32 %v767, %v617
    %771 = vrot.lane.b32.xlu0 %v258, 112
    %v772 = vpop.permute.xlu0 %771
    %773 = vrot.lane.b32.xlu0 %v252, 112
    %v774 = vpop.permute.xlu0 %773
    %v775 = vsel %vm265, %v772, 0
    %v777 = vsel %vm265, %v774, 0
    %779 = vmatprep.subr.mxu0 0.0
    %780 = vmatpush1.xpose.msra.mxu0 0.0
    %781 = vmatprep.subr.mxu0 0.0
    %782 = vmatpush1.xpose.msra.mxu0 0.0
    %783 = vmatprep.subr.mxu0 0.0
    %784 = vmatpush1.xpose.msra.mxu0 0.0
    %785 = vmatprep.subr.mxu0 0.0
    %786 = vmatpush1.xpose.msra.mxu0 0.0
    %787 = vmatprep.subr.mxu0 0.0
    %788 = vmatpush1.xpose.msra.mxu0 0.0
    %789 = vmatprep.subr.mxu0 0.0
    %790 = vmatpush1.xpose.msra.mxu0 0.0
    %791 = vmatprep.subr.mxu0 0.0
    %792 = vmatpush1.xpose.msra.mxu0 0.0
    %793 = vmatprep.subr.mxu0 0.0
    %794 = vmatpush1.xpose.msra.mxu0 0.0
    %795 = vmatprep.subr.mxu0 0.0
    %796 = vmatpush1.xpose.msra.mxu0 0.0
    %797 = vmatprep.subr.mxu0 0.0
    %798 = vmatpush1.xpose.msra.mxu0 0.0
    %799 = vmatprep.subr.mxu0 0.0
    %800 = vmatpush1.xpose.msra.mxu0 0.0
    %801 = vmatprep.subr.mxu0 0.0
    %802 = vmatpush1.xpose.msra.mxu0 0.0
    %803 = vmatprep.subr.mxu0 0.0
    %804 = vmatpush1.xpose.msra.mxu0 0.0
    %805 = vmatprep.subr.mxu0 0.0
    %806 = vmatpush1.xpose.msra.mxu0 0.0
    %807 = vmatprep.subr.mxu0 0.0
    %808 = vmatpush1.xpose.msra.mxu0 0.0
    %809 = vmatprep.subr.mxu0 0.0
    %810 = vmatpush1.xpose.msra.mxu0 %v777
    %811 = vmatprep.subr.mxu0 0.0
    %812 = vmatpush2.xpose.msra.mxu0 0.0
    %813 = vmatprep.subr.mxu0 0.0
    %814 = vmatpush2.xpose.msra.mxu0 0.0
    %815 = vmatprep.subr.mxu0 0.0
    %816 = vmatpush2.xpose.msra.mxu0 0.0
    %817 = vmatprep.subr.mxu0 0.0
    %818 = vmatpush2.xpose.msra.mxu0 0.0
    %819 = vmatprep.subr.mxu0 0.0
    %820 = vmatpush2.xpose.msra.mxu0 0.0
    %821 = vmatprep.subr.mxu0 0.0
    %822 = vmatpush2.xpose.msra.mxu0 0.0
    %823 = vmatprep.subr.mxu0 0.0
    %824 = vmatpush2.xpose.msra.mxu0 0.0
    %825 = vmatprep.subr.mxu0 0.0
    %826 = vmatpush2.xpose.msra.mxu0 0.0
    %827 = vmatprep.subr.mxu0 0.0
    %828 = vmatpush2.xpose.msra.mxu0 0.0
    %829 = vmatprep.subr.mxu0 0.0
    %830 = vmatpush2.xpose.msra.mxu0 0.0
    %831 = vmatprep.subr.mxu0 0.0
    %832 = vmatpush2.xpose.msra.mxu0 0.0
    %833 = vmatprep.subr.mxu0 0.0
    %834 = vmatpush2.xpose.msra.mxu0 0.0
    %835 = vmatprep.subr.mxu0 0.0
    %836 = vmatpush2.xpose.msra.mxu0 0.0
    %837 = vmatprep.subr.mxu0 0.0
    %838 = vmatpush2.xpose.msra.mxu0 0.0
    %839 = vmatprep.subr.mxu0 0.0
    %840 = vmatpush2.xpose.msra.mxu0 0.0
    %841 = vmatprep.subr.mxu0 0.0
    %842 = vmatpush2.xpose.msra.mxu0 0.0
    %843 = vmatprep.mubr.f32.mxu0 0.0
    %844 = vmatmul.mubr.f32.gmra.mxu0 %v775
    %v845 = vpop.f32.mrf.mxu0
    %v846 = vadd.f32 0.0, %v845
    %v847 = vpop.f32.mrf.mxu0
    %848 = vdwg.mxu0
    %v849 = vsel %vm265, %v846, -inf
    %850 = vmax.xlane.f32.xlu0 %v849
    %v851 = vpop.xlane.xlu0 %850
    %vm852 = vcmask 195712
    %v853 = vsel %vm852, %v342, -inf
    %854 = vmax.xlane.f32.xlu0 %v853
    %v855 = vpop.xlane.xlu0 %854
    %v856 = vmax.f32 %v851, %v855
    %v857 = vsub.f32 %v846, %v856
    %v858 = vmul.f32 %v857, 1.442695
    %v859 = vpow.pop %v858
    %v860 = vsub.f32 %v342, %v856
    %v861 = vmul.f32 %v860, 1.442695
    %v862 = vpow.pop %v861
    %v863 = vsel %vm265, %v859, 0.0
    %864 = vadd.xlane.f32.xlu0 %v863
    %v865 = vpop.xlane.xlu0 %864
    %867 = vrot.lane.b32.xlu0 %v862, 112
    %v868 = vpop.permute.xlu0 %867
    %v870 = vsel %vm265, %v868, 0.0
    %871 = vadd.xlane.f32.xlu0 %v870
    %v872 = vpop.xlane.xlu0 %871
    %v873 = vadd.f32 %v865, %v872
    %v874 = vrcp.pop %v873
    %875 = vrot.lane.b32.xlu0 %v259, 112
    %v876 = vpop.permute.xlu0 %875
    %v878 = vsel %vm265, %v868, 0
    %880 = vmatprep.subr.mxu0 0.0
    %881 = vmatpush1.msra.mxu0 0.0
    %882 = vmatprep.subr.mxu0 0.0
    %883 = vmatpush1.msra.mxu0 0.0
    %884 = vmatprep.subr.mxu0 0.0
    %885 = vmatpush1.msra.mxu0 0.0
    %886 = vmatprep.subr.mxu0 0.0
    %887 = vmatpush1.msra.mxu0 0.0
    %888 = vmatprep.subr.mxu0 0.0
    %889 = vmatpush1.msra.mxu0 0.0
    %890 = vmatprep.subr.mxu0 0.0
    %891 = vmatpush1.msra.mxu0 0.0
    %892 = vmatprep.subr.mxu0 0.0
    %893 = vmatpush1.msra.mxu0 0.0
    %894 = vmatprep.subr.mxu0 0.0
    %895 = vmatpush1.msra.mxu0 0.0
    %896 = vmatprep.subr.mxu0 0.0
    %897 = vmatpush1.msra.mxu0 0.0
    %898 = vmatprep.subr.mxu0 0.0
    %899 = vmatpush1.msra.mxu0 0.0
    %900 = vmatprep.subr.mxu0 0.0
    %901 = vmatpush1.msra.mxu0 0.0
    %902 = vmatprep.subr.mxu0 0.0
    %903 = vmatpush1.msra.mxu0 0.0
    %904 = vmatprep.subr.mxu0 0.0
    %905 = vmatpush1.msra.mxu0 0.0
    %906 = vmatprep.subr.mxu0 0.0
    %907 = vmatpush1.msra.mxu0 0.0
    %908 = vmatprep.subr.mxu0 0.0
    %909 = vmatpush1.msra.mxu0 0.0
    %910 = vmatprep.subr.mxu0 0.0
    %911 = vmatpush1.msra.mxu0 %v876
    %912 = vmatprep.subr.mxu0 0.0
    %913 = vmatpush2.msra.mxu0 0.0
    %914 = vmatprep.subr.mxu0 0.0
    %915 = vmatpush2.msra.mxu0 0.0
    %916 = vmatprep.subr.mxu0 0.0
    %917 = vmatpush2.msra.mxu0 0.0
    %918 = vmatprep.subr.mxu0 0.0
    %919 = vmatpush2.msra.mxu0 0.0
    %920 = vmatprep.subr.mxu0 0.0
    %921 = vmatpush2.msra.mxu0 0.0
    %922 = vmatprep.subr.mxu0 0.0
    %923 = vmatpush2.msra.mxu0 0.0
    %924 = vmatprep.subr.mxu0 0.0
    %925 = vmatpush2.msra.mxu0 0.0
    %926 = vmatprep.subr.mxu0 0.0
    %927 = vmatpush2.msra.mxu0 0.0
    %928 = vmatprep.subr.mxu0 0.0
    %929 = vmatpush2.msra.mxu0 0.0
    %930 = vmatprep.subr.mxu0 0.0
    %931 = vmatpush2.msra.mxu0 0.0
    %932 = vmatprep.subr.mxu0 0.0
    %933 = vmatpush2.msra.mxu0 0.0
    %934 = vmatprep.subr.mxu0 0.0
    %935 = vmatpush2.msra.mxu0 0.0
    %936 = vmatprep.subr.mxu0 0.0
    %937 = vmatpush2.msra.mxu0 0.0
    %938 = vmatprep.subr.mxu0 0.0
    %939 = vmatpush2.msra.mxu0 0.0
    %940 = vmatprep.subr.mxu0 0.0
    %941 = vmatpush2.msra.mxu0 0.0
    %942 = vmatprep.subr.mxu0 0.0
    %943 = vmatpush2.msra.mxu0 0.0
    %944 = vmatprep.mubr.f32.mxu0 0.0
    %945 = vmatmul.mubr.f32.gmra.mxu0 %v878
    %v946 = vpop.f32.mrf.mxu0
    %v947 = vadd.f32 0.0, %v946
    %v948 = vpop.f32.mrf.mxu0
    %949 = vdwg.mxu0
    %950 = vrot.lane.b32.xlu0 %v252, 80
    %v951 = vpop.permute.xlu0 %950
    %v954 = vsel %vm265, %v859, 0
    %956 = vmatprep.subr.mxu0 0.0
    %957 = vmatpush1.msra.mxu0 0.0
    %958 = vmatprep.subr.mxu0 0.0
    %959 = vmatpush1.msra.mxu0 0.0
    %960 = vmatprep.subr.mxu0 0.0
    %961 = vmatpush1.msra.mxu0 0.0
    %962 = vmatprep.subr.mxu0 0.0
    %963 = vmatpush1.msra.mxu0 0.0
    %964 = vmatprep.subr.mxu0 0.0
    %965 = vmatpush1.msra.mxu0 0.0
    %966 = vmatprep.subr.mxu0 0.0
    %967 = vmatpush1.msra.mxu0 0.0
    %968 = vmatprep.subr.mxu0 0.0
    %969 = vmatpush1.msra.mxu0 0.0
    %970 = vmatprep.subr.mxu0 0.0
    %971 = vmatpush1.msra.mxu0 0.0
    %972 = vmatprep.subr.mxu0 0.0
    %973 = vmatpush1.msra.mxu0 0.0
    %974 = vmatprep.subr.mxu0 0.0
    %975 = vmatpush1.msra.mxu0 0.0
    %976 = vmatprep.subr.mxu0 0.0
    %977 = vmatpush1.msra.mxu0 0.0
    %978 = vmatprep.subr.mxu0 0.0
    %979 = vmatpush1.msra.mxu0 0.0
    %980 = vmatprep.subr.mxu0 0.0
    %981 = vmatpush1.msra.mxu0 0.0
    %982 = vmatprep.subr.mxu0 0.0
    %983 = vmatpush1.msra.mxu0 0.0
    %984 = vmatprep.subr.mxu0 0.0
    %985 = vmatpush1.msra.mxu0 0.0
    %986 = vmatprep.subr.mxu0 0.0
    %987 = vmatpush1.msra.mxu0 %v951
    %988 = vmatprep.subr.mxu0 0.0
    %989 = vmatpush2.msra.mxu0 0.0
    %990 = vmatprep.subr.mxu0 0.0
    %991 = vmatpush2.msra.mxu0 0.0
    %992 = vmatprep.subr.mxu0 0.0
    %993 = vmatpush2.msra.mxu0 0.0
    %994 = vmatprep.subr.mxu0 0.0
    %995 = vmatpush2.msra.mxu0 0.0
    %996 = vmatprep.subr.mxu0 0.0
    %997 = vmatpush2.msra.mxu0 0.0
    %998 = vmatprep.subr.mxu0 0.0
    %999 = vmatpush2.msra.mxu0 0.0
    %1000 = vmatprep.subr.mxu0 0.0
    %1001 = vmatpush2.msra.mxu0 0.0
    %1002 = vmatprep.subr.mxu0 0.0
    %1003 = vmatpush2.msra.mxu0 0.0
    %1004 = vmatprep.subr.mxu0 0.0
    %1005 = vmatpush2.msra.mxu0 0.0
    %1006 = vmatprep.subr.mxu0 0.0
    %1007 = vmatpush2.msra.mxu0 0.0
    %1008 = vmatprep.subr.mxu0 0.0
    %1009 = vmatpush2.msra.mxu0 0.0
    %1010 = vmatprep.subr.mxu0 0.0
    %1011 = vmatpush2.msra.mxu0 0.0
    %1012 = vmatprep.subr.mxu0 0.0
    %1013 = vmatpush2.msra.mxu0 0.0
    %1014 = vmatprep.subr.mxu0 0.0
    %1015 = vmatpush2.msra.mxu0 0.0
    %1016 = vmatprep.subr.mxu0 0.0
    %1017 = vmatpush2.msra.mxu0 0.0
    %1018 = vmatprep.subr.mxu0 0.0
    %1019 = vmatpush2.msra.mxu0 0.0
    %1020 = vmatprep.mubr.f32.mxu0 0.0
    %1021 = vmatmul.mubr.f32.gmra.mxu0 %v954
    %v1022 = vpop.f32.mrf.mxu0
    %v1023 = vadd.f32 %v947, %v1022
    %v1024 = vpop.f32.mrf.mxu0
    %1025 = vdwg.mxu0
    %v1026 = vmul.f32 %v1023, %v874
    %1027 = vrot.lane.b32.xlu0 %v258, 104
    %v1028 = vpop.permute.xlu0 %1027
    %1029 = vrot.lane.b32.xlu0 %v252, 104
    %v1030 = vpop.permute.xlu0 %1029
    %v1031 = vsel %vm265, %v1028, 0
    %v1033 = vsel %vm265, %v1030, 0
    %1035 = vmatprep.subr.mxu0 0.0
    %1036 = vmatpush1.xpose.msra.mxu0 0.0
    %1037 = vmatprep.subr.mxu0 0.0
    %1038 = vmatpush1.xpose.msra.mxu0 0.0
    %1039 = vmatprep.subr.mxu0 0.0
    %1040 = vmatpush1.xpose.msra.mxu0 0.0
    %1041 = vmatprep.subr.mxu0 0.0
    %1042 = vmatpush1.xpose.msra.mxu0 0.0
    %1043 = vmatprep.subr.mxu0 0.0
    %1044 = vmatpush1.xpose.msra.mxu0 0.0
    %1045 = vmatprep.subr.mxu0 0.0
    %1046 = vmatpush1.xpose.msra.mxu0 0.0
    %1047 = vmatprep.subr.mxu0 0.0
    %1048 = vmatpush1.xpose.msra.mxu0 0.0
    %1049 = vmatprep.subr.mxu0 0.0
    %1050 = vmatpush1.xpose.msra.mxu0 0.0
    %1051 = vmatprep.subr.mxu0 0.0
    %1052 = vmatpush1.xpose.msra.mxu0 0.0
    %1053 = vmatprep.subr.mxu0 0.0
    %1054 = vmatpush1.xpose.msra.mxu0 0.0
    %1055 = vmatprep.subr.mxu0 0.0
    %1056 = vmatpush1.xpose.msra.mxu0 0.0
    %1057 = vmatprep.subr.mxu0 0.0
    %1058 = vmatpush1.xpose.msra.mxu0 0.0
    %1059 = vmatprep.subr.mxu0 0.0
    %1060 = vmatpush1.xpose.msra.mxu0 0.0
    %1061 = vmatprep.subr.mxu0 0.0
    %1062 = vmatpush1.xpose.msra.mxu0 0.0
    %1063 = vmatprep.subr.mxu0 0.0
    %1064 = vmatpush1.xpose.msra.mxu0 0.0
    %1065 = vmatprep.subr.mxu0 0.0
    %1066 = vmatpush1.xpose.msra.mxu0 %v1033
    %1067 = vmatprep.subr.mxu0 0.0
    %1068 = vmatpush2.xpose.msra.mxu0 0.0
    %1069 = vmatprep.subr.mxu0 0.0
    %1070 = vmatpush2.xpose.msra.mxu0 0.0
    %1071 = vmatprep.subr.mxu0 0.0
    %1072 = vmatpush2.xpose.msra.mxu0 0.0
    %1073 = vmatprep.subr.mxu0 0.0
    %1074 = vmatpush2.xpose.msra.mxu0 0.0
    %1075 = vmatprep.subr.mxu0 0.0
    %1076 = vmatpush2.xpose.msra.mxu0 0.0
    %1077 = vmatprep.subr.mxu0 0.0
    %1078 = vmatpush2.xpose.msra.mxu0 0.0
    %1079 = vmatprep.subr.mxu0 0.0
    %1080 = vmatpush2.xpose.msra.mxu0 0.0
    %1081 = vmatprep.subr.mxu0 0.0
    %1082 = vmatpush2.xpose.msra.mxu0 0.0
    %1083 = vmatprep.subr.mxu0 0.0
    %1084 = vmatpush2.xpose.msra.mxu0 0.0
    %1085 = vmatprep.subr.mxu0 0.0
    %1086 = vmatpush2.xpose.msra.mxu0 0.0
    %1087 = vmatprep.subr.mxu0 0.0
    %1088 = vmatpush2.xpose.msra.mxu0 0.0
    %1089 = vmatprep.subr.mxu0 0.0
    %1090 = vmatpush2.xpose.msra.mxu0 0.0
    %1091 = vmatprep.subr.mxu0 0.0
    %1092 = vmatpush2.xpose.msra.mxu0 0.0
    %1093 = vmatprep.subr.mxu0 0.0
    %1094 = vmatpush2.xpose.msra.mxu0 0.0
    %1095 = vmatprep.subr.mxu0 0.0
    %1096 = vmatpush2.xpose.msra.mxu0 0.0
    %1097 = vmatprep.subr.mxu0 0.0
    %1098 = vmatpush2.xpose.msra.mxu0 0.0
    %1099 = vmatprep.mubr.f32.mxu0 0.0
    %1100 = vmatmul.mubr.f32.gmra.mxu0 %v1031
    %v1101 = vpop.f32.mrf.mxu0
    %v1102 = vadd.f32 0.0, %v1101
    %v1103 = vpop.f32.mrf.mxu0
    %1104 = vdwg.mxu0
    %v1105 = vsel %vm265, %v1102, -inf
    %1106 = vmax.xlane.f32.xlu0 %v1105
    %v1107 = vpop.xlane.xlu0 %1106
    %vm1108 = vcmask 261312
    %v1109 = vsel %vm1108, %v342, -inf
    %1110 = vmax.xlane.f32.xlu0 %v1109
    %v1111 = vpop.xlane.xlu0 %1110
    %v1112 = vmax.f32 %v1107, %v1111
    %v1113 = vsub.f32 %v1102, %v1112
    %v1114 = vmul.f32 %v1113, 1.442695
    %v1115 = vpow.pop %v1114
    %v1116 = vsub.f32 %v342, %v1112
    %v1117 = vmul.f32 %v1116, 1.442695
    %v1118 = vpow.pop %v1117
    %v1119 = vsel %vm265, %v1115, 0.0
    %1120 = vadd.xlane.f32.xlu0 %v1119
    %v1121 = vpop.xlane.xlu0 %1120
    %1123 = vrot.lane.b32.xlu0 %v1118, 104
    %v1124 = vpop.permute.xlu0 %1123
    %v1126 = vsel %vm265, %v1124, 0.0
    %1127 = vadd.xlane.f32.xlu0 %v1126
    %v1128 = vpop.xlane.xlu0 %1127
    %v1129 = vadd.f32 %v1121, %v1128
    %v1130 = vrcp.pop %v1129
    %1131 = vrot.lane.b32.xlu0 %v259, 104
    %v1132 = vpop.permute.xlu0 %1131
    %v1134 = vsel %vm265, %v1124, 0
    %1136 = vmatprep.subr.mxu0 0.0
    %1137 = vmatpush1.msra.mxu0 0.0
    %1138 = vmatprep.subr.mxu0 0.0
    %1139 = vmatpush1.msra.mxu0 0.0
    %1140 = vmatprep.subr.mxu0 0.0
    %1141 = vmatpush1.msra.mxu0 0.0
    %1142 = vmatprep.subr.mxu0 0.0
    %1143 = vmatpush1.msra.mxu0 0.0
    %1144 = vmatprep.subr.mxu0 0.0
    %1145 = vmatpush1.msra.mxu0 0.0
    %1146 = vmatprep.subr.mxu0 0.0
    %1147 = vmatpush1.msra.mxu0 0.0
    %1148 = vmatprep.subr.mxu0 0.0
    %1149 = vmatpush1.msra.mxu0 0.0
    %1150 = vmatprep.subr.mxu0 0.0
    %1151 = vmatpush1.msra.mxu0 0.0
    %1152 = vmatprep.subr.mxu0 0.0
    %1153 = vmatpush1.msra.mxu0 0.0
    %1154 = vmatprep.subr.mxu0 0.0
    %1155 = vmatpush1.msra.mxu0 0.0
    %1156 = vmatprep.subr.mxu0 0.0
    %1157 = vmatpush1.msra.mxu0 0.0
    %1158 = vmatprep.subr.mxu0 0.0
    %1159 = vmatpush1.msra.mxu0 0.0
    %1160 = vmatprep.subr.mxu0 0.0
    %1161 = vmatpush1.msra.mxu0 0.0
    %1162 = vmatprep.subr.mxu0 0.0
    %1163 = vmatpush1.msra.mxu0 0.0
    %1164 = vmatprep.subr.mxu0 0.0
    %1165 = vmatpush1.msra.mxu0 0.0
    %1166 = vmatprep.subr.mxu0 0.0
    %1167 = vmatpush1.msra.mxu0 %v1132
    %1168 = vmatprep.subr.mxu0 0.0
    %1169 = vmatpush2.msra.mxu0 0.0
    %1170 = vmatprep.subr.mxu0 0.0
    %1171 = vmatpush2.msra.mxu0 0.0
    %1172 = vmatprep.subr.mxu0 0.0
    %1173 = vmatpush2.msra.mxu0 0.0
    %1174 = vmatprep.subr.mxu0 0.0
    %1175 = vmatpush2.msra.mxu0 0.0
    %1176 = vmatprep.subr.mxu0 0.0
    %1177 = vmatpush2.msra.mxu0 0.0
    %1178 = vmatprep.subr.mxu0 0.0
    %1179 = vmatpush2.msra.mxu0 0.0
    %1180 = vmatprep.subr.mxu0 0.0
    %1181 = vmatpush2.msra.mxu0 0.0
    %1182 = vmatprep.subr.mxu0 0.0
    %1183 = vmatpush2.msra.mxu0 0.0
    %1184 = vmatprep.subr.mxu0 0.0
    %1185 = vmatpush2.msra.mxu0 0.0
    %1186 = vmatprep.subr.mxu0 0.0
    %1187 = vmatpush2.msra.mxu0 0.0
    %1188 = vmatprep.subr.mxu0 0.0
    %1189 = vmatpush2.msra.mxu0 0.0
    %1190 = vmatprep.subr.mxu0 0.0
    %1191 = vmatpush2.msra.mxu0 0.0
    %1192 = vmatprep.subr.mxu0 0.0
    %1193 = vmatpush2.msra.mxu0 0.0
    %1194 = vmatprep.subr.mxu0 0.0
    %1195 = vmatpush2.msra.mxu0 0.0
    %1196 = vmatprep.subr.mxu0 0.0
    %1197 = vmatpush2.msra.mxu0 0.0
    %1198 = vmatprep.subr.mxu0 0.0
    %1199 = vmatpush2.msra.mxu0 0.0
    %1200 = vmatprep.mubr.f32.mxu0 0.0
    %1201 = vmatmul.mubr.f32.gmra.mxu0 %v1134
    %v1202 = vpop.f32.mrf.mxu0
    %v1203 = vadd.f32 0.0, %v1202
    %v1204 = vpop.f32.mrf.mxu0
    %1205 = vdwg.mxu0
    %1206 = vrot.lane.b32.xlu0 %v252, 72
    %v1207 = vpop.permute.xlu0 %1206
    %v1210 = vsel %vm265, %v1115, 0
    %1212 = vmatprep.subr.mxu0 0.0
    %1213 = vmatpush1.msra.mxu0 0.0
    %1214 = vmatprep.subr.mxu0 0.0
    %1215 = vmatpush1.msra.mxu0 0.0
    %1216 = vmatprep.subr.mxu0 0.0
    %1217 = vmatpush1.msra.mxu0 0.0
    %1218 = vmatprep.subr.mxu0 0.0
    %1219 = vmatpush1.msra.mxu0 0.0
    %1220 = vmatprep.subr.mxu0 0.0
    %1221 = vmatpush1.msra.mxu0 0.0
    %1222 = vmatprep.subr.mxu0 0.0
    %1223 = vmatpush1.msra.mxu0 0.0
    %1224 = vmatprep.subr.mxu0 0.0
    %1225 = vmatpush1.msra.mxu0 0.0
    %1226 = vmatprep.subr.mxu0 0.0
    %1227 = vmatpush1.msra.mxu0 0.0
    %1228 = vmatprep.subr.mxu0 0.0
    %1229 = vmatpush1.msra.mxu0 0.0
    %1230 = vmatprep.subr.mxu0 0.0
    %1231 = vmatpush1.msra.mxu0 0.0
    %1232 = vmatprep.subr.mxu0 0.0
    %1233 = vmatpush1.msra.mxu0 0.0
    %1234 = vmatprep.subr.mxu0 0.0
    %1235 = vmatpush1.msra.mxu0 0.0
    %1236 = vmatprep.subr.mxu0 0.0
    %1237 = vmatpush1.msra.mxu0 0.0
    %1238 = vmatprep.subr.mxu0 0.0
    %1239 = vmatpush1.msra.mxu0 0.0
    %1240 = vmatprep.subr.mxu0 0.0
    %1241 = vmatpush1.msra.mxu0 0.0
    %1242 = vmatprep.subr.mxu0 0.0
    %1243 = vmatpush1.msra.mxu0 %v1207
    %1244 = vmatprep.subr.mxu0 0.0
    %1245 = vmatpush2.msra.mxu0 0.0
    %1246 = vmatprep.subr.mxu0 0.0
    %1247 = vmatpush2.msra.mxu0 0.0
    %1248 = vmatprep.subr.mxu0 0.0
    %1249 = vmatpush2.msra.mxu0 0.0
    %1250 = vmatprep.subr.mxu0 0.0
    %1251 = vmatpush2.msra.mxu0 0.0
    %1252 = vmatprep.subr.mxu0 0.0
    %1253 = vmatpush2.msra.mxu0 0.0
    %1254 = vmatprep.subr.mxu0 0.0
    %1255 = vmatpush2.msra.mxu0 0.0
    %1256 = vmatprep.subr.mxu0 0.0
    %1257 = vmatpush2.msra.mxu0 0.0
    %1258 = vmatprep.subr.mxu0 0.0
    %1259 = vmatpush2.msra.mxu0 0.0
    %1260 = vmatprep.subr.mxu0 0.0
    %1261 = vmatpush2.msra.mxu0 0.0
    %1262 = vmatprep.subr.mxu0 0.0
    %1263 = vmatpush2.msra.mxu0 0.0
    %1264 = vmatprep.subr.mxu0 0.0
    %1265 = vmatpush2.msra.mxu0 0.0
    %1266 = vmatprep.subr.mxu0 0.0
    %1267 = vmatpush2.msra.mxu0 0.0
    %1268 = vmatprep.subr.mxu0 0.0
    %1269 = vmatpush2.msra.mxu0 0.0
    %1270 = vmatprep.subr.mxu0 0.0
    %1271 = vmatpush2.msra.mxu0 0.0
    %1272 = vmatprep.subr.mxu0 0.0
    %1273 = vmatpush2.msra.mxu0 0.0
    %1274 = vmatprep.subr.mxu0 0.0
    %1275 = vmatpush2.msra.mxu0 0.0
    %1276 = vmatprep.mubr.f32.mxu0 0.0
    %1277 = vmatmul.mubr.f32.gmra.mxu0 %v1210
    %v1278 = vpop.f32.mrf.mxu0
    %v1279 = vadd.f32 %v1203, %v1278
    %v1280 = vpop.f32.mrf.mxu0
    %1281 = vdwg.mxu0
    %v1282 = vmul.f32 %v1279, %v1130
    %1284 = vrot.lane.b32.xlu0 %v770, 8
    %v1285 = vpop.permute.xlu0 %1284
    %1288 = vrot.lane.b32.xlu0 %v1026, 16
    %v1289 = vpop.permute.xlu0 %1288
    %1292 = vrot.lane.b32.xlu0 %v1282, 24
    %v1293 = vpop.permute.xlu0 %1292
    %v1295 = vsel %vm265, %v513, %v1285
    %v1296 = vsel %vm144, %v1295, %v1289
    %vm1297 = vcmask 195584
    %v1298 = vsel %vm1297, %v1296, %v1293
    %v1299 = vpack.c.bf16 %v1298, %v1298
    %v1301 = vlaneseq
    %v1302 = vshrl.u32 %v1301, 7
    %v1303 = vsub.s32 0, %v1302
    %v1304 = vrot.slane %v264, %v1303
    %v1310 = vunpack.c.l.b16 %v260
    %v1311 = vunpack.c.l.b16 %v261
    %v1312 = vunpack.c.l.b16 %v262
    %v1313 = vunpack.c.l.b16 %v263
    %v1314 = vpack.c.b16 %v1311, %v1310
    %v1315 = vpack.c.b16 %v1313, %v1312
    %v1319 = vsel %vm213, %v1299, 0
    %1321 = vmatprep.subr.bf16.mxu0 0
    %1322 = vmatpush1.bf16.msra.mxu0 0
    %1323 = vmatprep.subr.bf16.mxu0 0
    %1324 = vmatpush1.bf16.msra.mxu0 0
    %1325 = vmatprep.subr.bf16.mxu0 0
    %1326 = vmatpush1.bf16.msra.mxu0 0
    %1327 = vmatprep.subr.bf16.mxu0 0
    %1328 = vmatpush1.bf16.msra.mxu0 0
    %1329 = vmatprep.subr.bf16.mxu0 0
    %1330 = vmatpush1.bf16.msra.mxu0 0
    %1331 = vmatprep.subr.bf16.mxu0 0
    %1332 = vmatpush1.bf16.msra.mxu0 0
    %1333 = vmatprep.subr.bf16.mxu0 0
    %1334 = vmatpush1.bf16.msra.mxu0 %v1315
    %1335 = vmatprep.subr.bf16.mxu0 0
    %1336 = vmatpush1.bf16.msra.mxu0 %v1314
    %1337 = vmatprep.subr.bf16.mxu0 0
    %1338 = vmatpush2.bf16.msra.mxu0 0
    %1339 = vmatprep.subr.bf16.mxu0 0
    %1340 = vmatpush2.bf16.msra.mxu0 0
    %1341 = vmatprep.subr.bf16.mxu0 0
    %1342 = vmatpush2.bf16.msra.mxu0 0
    %1343 = vmatprep.subr.bf16.mxu0 0
    %1344 = vmatpush2.bf16.msra.mxu0 0
    %1345 = vmatprep.subr.bf16.mxu0 0
    %1346 = vmatpush2.bf16.msra.mxu0 0
    %1347 = vmatprep.subr.bf16.mxu0 0
    %1348 = vmatpush2.bf16.msra.mxu0 0
    %1349 = vmatprep.subr.bf16.mxu0 0
    %1350 = vmatpush2.bf16.msra.mxu0 0
    %1351 = vmatprep.subr.bf16.mxu0 0
    %1352 = vmatpush2.bf16.msra.mxu0 0
    %1353 = vmatprep.mubr.bf16.mxu0 0
    %1354 = vmatmul.mubr.bf16.gmra.mxu0 %v1319
    %v1355 = vpop.f32.mrf.mxu0
    %v1356 = vadd.f32 %v1304, %v1355
    %v1357 = vpop.f32.mrf.mxu0
    %v1358 = vpop.f32.mrf.mxu0
    %v1359 = vpop.f32.mrf.mxu0
    %1360 = vdwg.mxu0
    %1361 = vst.msk [vmem:[#allocation14] sm:$0xff] %vm213, %v1356
    %v1363 = vsel %vm265, %v255, 0
    %1365 = vmatprep.subr.mxu0 0.0
    %1366 = vmatpush1.xpose.msra.mxu0 0.0
    %1367 = vmatprep.subr.mxu0 0.0
    %1368 = vmatpush1.xpose.msra.mxu0 0.0
    %1369 = vmatprep.subr.mxu0 0.0
    %1370 = vmatpush1.xpose.msra.mxu0 0.0
    %1371 = vmatprep.subr.mxu0 0.0
    %1372 = vmatpush1.xpose.msra.mxu0 0.0
    %1373 = vmatprep.subr.mxu0 0.0
    %1374 = vmatpush1.xpose.msra.mxu0 0.0
    %1375 = vmatprep.subr.mxu0 0.0
    %1376 = vmatpush1.xpose.msra.mxu0 0.0
    %1377 = vmatprep.subr.mxu0 0.0
    %1378 = vmatpush1.xpose.msra.mxu0 0.0
    %1379 = vmatprep.subr.mxu0 0.0
    %1380 = vmatpush1.xpose.msra.mxu0 0.0
    %1381 = vmatprep.subr.mxu0 0.0
    %1382 = vmatpush1.xpose.msra.mxu0 0.0
    %1383 = vmatprep.subr.mxu0 0.0
    %1384 = vmatpush1.xpose.msra.mxu0 0.0
    %1385 = vmatprep.subr.mxu0 0.0
    %1386 = vmatpush1.xpose.msra.mxu0 0.0
    %1387 = vmatprep.subr.mxu0 0.0
    %1388 = vmatpush1.xpose.msra.mxu0 0.0
    %1389 = vmatprep.subr.mxu0 0.0
    %1390 = vmatpush1.xpose.msra.mxu0 0.0
    %1391 = vmatprep.subr.mxu0 0.0
    %1392 = vmatpush1.xpose.msra.mxu0 0.0
    %1393 = vmatprep.subr.mxu0 0.0
    %1394 = vmatpush1.xpose.msra.mxu0 0.0
    %1395 = vmatprep.subr.mxu0 0.0
    %1396 = vmatpush1.xpose.msra.mxu0 %v1363
    %1397 = vmatprep.subr.mxu0 0.0
    %1398 = vmatpush2.xpose.msra.mxu0 0.0
    %1399 = vmatprep.subr.mxu0 0.0
    %1400 = vmatpush2.xpose.msra.mxu0 0.0
    %1401 = vmatprep.subr.mxu0 0.0
    %1402 = vmatpush2.xpose.msra.mxu0 0.0
    %1403 = vmatprep.subr.mxu0 0.0
    %1404 = vmatpush2.xpose.msra.mxu0 0.0
    %1405 = vmatprep.subr.mxu0 0.0
    %1406 = vmatpush2.xpose.msra.mxu0 0.0
    %1407 = vmatprep.subr.mxu0 0.0
    %1408 = vmatpush2.xpose.msra.mxu0 0.0
    %1409 = vmatprep.subr.mxu0 0.0
    %1410 = vmatpush2.xpose.msra.mxu0 0.0
    %1411 = vmatprep.subr.mxu0 0.0
    %1412 = vmatpush2.xpose.msra.mxu0 0.0
    %1413 = vmatprep.subr.mxu0 0.0
    %1414 = vmatpush2.xpose.msra.mxu0 0.0
    %1415 = vmatprep.subr.mxu0 0.0
    %1416 = vmatpush2.xpose.msra.mxu0 0.0
    %1417 = vmatprep.subr.mxu0 0.0
    %1418 = vmatpush2.xpose.msra.mxu0 0.0
    %1419 = vmatprep.subr.mxu0 0.0
    %1420 = vmatpush2.xpose.msra.mxu0 0.0
    %1421 = vmatprep.subr.mxu0 0.0
    %1422 = vmatpush2.xpose.msra.mxu0 0.0
    %1423 = vmatprep.subr.mxu0 0.0
    %1424 = vmatpush2.xpose.msra.mxu0 0.0
    %1425 = vmatprep.subr.mxu0 0.0
    %1426 = vmatpush2.xpose.msra.mxu0 0.0
    %1427 = vmatprep.subr.mxu0 0.0
    %1428 = vmatpush2.xpose.msra.mxu0 0.0
    %1429 = vmatprep.mubr.f32.mxu0 0.0
    %1430 = vmatmul.mubr.f32.gmra.mxu0 %v267
    %v1431 = vpop.f32.mrf.mxu0
    %v1432 = vadd.f32 0.0, %v1431
    %v1433 = vpop.f32.mrf.mxu0
    %1434 = vdwg.mxu0
    %v1435 = vld [vmem:[#allocation10] sm:$0xff]
    %v1436 = vsel %vm265, %v1432, -inf
    %1437 = vmax.xlane.f32.xlu0 %v1436
    %v1438 = vpop.xlane.xlu0 %1437
    %v1439 = vsel %vm265, %v1435, -inf
    %1440 = vmax.xlane.f32.xlu0 %v1439
    %v1441 = vpop.xlane.xlu0 %1440
    %v1442 = vmax.f32 %v1438, %v1441
    %v1443 = vsub.f32 %v1432, %v1442
    %v1444 = vmul.f32 %v1443, 1.442695
    %v1445 = vpow.pop %v1444
    %v1446 = vsub.f32 %v1435, %v1442
    %v1447 = vmul.f32 %v1446, 1.442695
    %v1448 = vpow.pop %v1447
    %v1449 = vsel %vm265, %v1445, 0.0
    %1450 = vadd.xlane.f32.xlu0 %v1449
    %v1451 = vpop.xlane.xlu0 %1450
    %v1452 = vsel %vm265, %v1448, 0.0
    %1453 = vadd.xlane.f32.xlu0 %v1452
    %v1454 = vpop.xlane.xlu0 %1453
    %v1455 = vadd.f32 %v1451, %v1454
    %v1456 = vrcp.pop %v1455
    %v1458 = vsel %vm265, %v1448, 0
    %1460 = vmatprep.subr.mxu0 0.0
    %1461 = vmatpush1.msra.mxu0 0.0
    %1462 = vmatprep.subr.mxu0 0.0
    %1463 = vmatpush1.msra.mxu0 0.0
    %1464 = vmatprep.subr.mxu0 0.0
    %1465 = vmatpush1.msra.mxu0 0.0
    %1466 = vmatprep.subr.mxu0 0.0
    %1467 = vmatpush1.msra.mxu0 0.0
    %1468 = vmatprep.subr.mxu0 0.0
    %1469 = vmatpush1.msra.mxu0 0.0
    %1470 = vmatprep.subr.mxu0 0.0
    %1471 = vmatpush1.msra.mxu0 0.0
    %1472 = vmatprep.subr.mxu0 0.0
    %1473 = vmatpush1.msra.mxu0 0.0
    %1474 = vmatprep.subr.mxu0 0.0
    %1475 = vmatpush1.msra.mxu0 0.0
    %1476 = vmatprep.subr.mxu0 0.0
    %1477 = vmatpush1.msra.mxu0 0.0
    %1478 = vmatprep.subr.mxu0 0.0
    %1479 = vmatpush1.msra.mxu0 0.0
    %1480 = vmatprep.subr.mxu0 0.0
    %1481 = vmatpush1.msra.mxu0 0.0
    %1482 = vmatprep.subr.mxu0 0.0
    %1483 = vmatpush1.msra.mxu0 0.0
    %1484 = vmatprep.subr.mxu0 0.0
    %1485 = vmatpush1.msra.mxu0 0.0
    %1486 = vmatprep.subr.mxu0 0.0
    %1487 = vmatpush1.msra.mxu0 0.0
    %1488 = vmatprep.subr.mxu0 0.0
    %1489 = vmatpush1.msra.mxu0 0.0
    %1490 = vmatprep.subr.mxu0 0.0
    %1491 = vmatpush1.msra.mxu0 %v259
    %1492 = vmatprep.subr.mxu0 0.0
    %1493 = vmatpush2.msra.mxu0 0.0
    %1494 = vmatprep.subr.mxu0 0.0
    %1495 = vmatpush2.msra.mxu0 0.0
    %1496 = vmatprep.subr.mxu0 0.0
    %1497 = vmatpush2.msra.mxu0 0.0
    %1498 = vmatprep.subr.mxu0 0.0
    %1499 = vmatpush2.msra.mxu0 0.0
    %1500 = vmatprep.subr.mxu0 0.0
    %1501 = vmatpush2.msra.mxu0 0.0
    %1502 = vmatprep.subr.mxu0 0.0
    %1503 = vmatpush2.msra.mxu0 0.0
    %1504 = vmatprep.subr.mxu0 0.0
    %1505 = vmatpush2.msra.mxu0 0.0
    %1506 = vmatprep.subr.mxu0 0.0
    %1507 = vmatpush2.msra.mxu0 0.0
    %1508 = vmatprep.subr.mxu0 0.0
    %1509 = vmatpush2.msra.mxu0 0.0
    %1510 = vmatprep.subr.mxu0 0.0
    %1511 = vmatpush2.msra.mxu0 0.0
    %1512 = vmatprep.subr.mxu0 0.0
    %1513 = vmatpush2.msra.mxu0 0.0
    %1514 = vmatprep.subr.mxu0 0.0
    %1515 = vmatpush2.msra.mxu0 0.0
    %1516 = vmatprep.subr.mxu0 0.0
    %1517 = vmatpush2.msra.mxu0 0.0
    %1518 = vmatprep.subr.mxu0 0.0
    %1519 = vmatpush2.msra.mxu0 0.0
    %1520 = vmatprep.subr.mxu0 0.0
    %1521 = vmatpush2.msra.mxu0 0.0
    %1522 = vmatprep.subr.mxu0 0.0
    %1523 = vmatpush2.msra.mxu0 0.0
    %1524 = vmatprep.mubr.f32.mxu0 0.0
    %1525 = vmatmul.mubr.f32.gmra.mxu0 %v1458
    %v1526 = vpop.f32.mrf.mxu0
    %v1527 = vadd.f32 0.0, %v1526
    %v1528 = vpop.f32.mrf.mxu0
    %1529 = vdwg.mxu0
    %1530 = vrot.lane.b32.xlu0 %v255, 96
    %v1531 = vpop.permute.xlu0 %1530
    %v1534 = vsel %vm265, %v1445, 0
    %1536 = vmatprep.subr.mxu0 0.0
    %1537 = vmatpush1.msra.mxu0 0.0
    %1538 = vmatprep.subr.mxu0 0.0
    %1539 = vmatpush1.msra.mxu0 0.0
    %1540 = vmatprep.subr.mxu0 0.0
    %1541 = vmatpush1.msra.mxu0 0.0
    %1542 = vmatprep.subr.mxu0 0.0
    %1543 = vmatpush1.msra.mxu0 0.0
    %1544 = vmatprep.subr.mxu0 0.0
    %1545 = vmatpush1.msra.mxu0 0.0
    %1546 = vmatprep.subr.mxu0 0.0
    %1547 = vmatpush1.msra.mxu0 0.0
    %1548 = vmatprep.subr.mxu0 0.0
    %1549 = vmatpush1.msra.mxu0 0.0
    %1550 = vmatprep.subr.mxu0 0.0
    %1551 = vmatpush1.msra.mxu0 0.0
    %1552 = vmatprep.subr.mxu0 0.0
    %1553 = vmatpush1.msra.mxu0 0.0
    %1554 = vmatprep.subr.mxu0 0.0
    %1555 = vmatpush1.msra.mxu0 0.0
    %1556 = vmatprep.subr.mxu0 0.0
    %1557 = vmatpush1.msra.mxu0 0.0
    %1558 = vmatprep.subr.mxu0 0.0
    %1559 = vmatpush1.msra.mxu0 0.0
    %1560 = vmatprep.subr.mxu0 0.0
    %1561 = vmatpush1.msra.mxu0 0.0
    %1562 = vmatprep.subr.mxu0 0.0
    %1563 = vmatpush1.msra.mxu0 0.0
    %1564 = vmatprep.subr.mxu0 0.0
    %1565 = vmatpush1.msra.mxu0 0.0
    %1566 = vmatprep.subr.mxu0 0.0
    %1567 = vmatpush1.msra.mxu0 %v1531
    %1568 = vmatprep.subr.mxu0 0.0
    %1569 = vmatpush2.msra.mxu0 0.0
    %1570 = vmatprep.subr.mxu0 0.0
    %1571 = vmatpush2.msra.mxu0 0.0
    %1572 = vmatprep.subr.mxu0 0.0
    %1573 = vmatpush2.msra.mxu0 0.0
    %1574 = vmatprep.subr.mxu0 0.0
    %1575 = vmatpush2.msra.mxu0 0.0
    %1576 = vmatprep.subr.mxu0 0.0
    %1577 = vmatpush2.msra.mxu0 0.0
    %1578 = vmatprep.subr.mxu0 0.0
    %1579 = vmatpush2.msra.mxu0 0.0
    %1580 = vmatprep.subr.mxu0 0.0
    %1581 = vmatpush2.msra.mxu0 0.0
    %1582 = vmatprep.subr.mxu0 0.0
    %1583 = vmatpush2.msra.mxu0 0.0
    %1584 = vmatprep.subr.mxu0 0.0
    %1585 = vmatpush2.msra.mxu0 0.0
    %1586 = vmatprep.subr.mxu0 0.0
    %1587 = vmatpush2.msra.mxu0 0.0
    %1588 = vmatprep.subr.mxu0 0.0
    %1589 = vmatpush2.msra.mxu0 0.0
    %1590 = vmatprep.subr.mxu0 0.0
    %1591 = vmatpush2.msra.mxu0 0.0
    %1592 = vmatprep.subr.mxu0 0.0
    %1593 = vmatpush2.msra.mxu0 0.0
    %1594 = vmatprep.subr.mxu0 0.0
    %1595 = vmatpush2.msra.mxu0 0.0
    %1596 = vmatprep.subr.mxu0 0.0
    %1597 = vmatpush2.msra.mxu0 0.0
    %1598 = vmatprep.subr.mxu0 0.0
    %1599 = vmatpush2.msra.mxu0 0.0
    %1600 = vmatprep.mubr.f32.mxu0 0.0
    %1601 = vmatmul.mubr.f32.gmra.mxu0 %v1534
    %v1602 = vpop.f32.mrf.mxu0
    %v1603 = vadd.f32 %v1527, %v1602
    %v1604 = vpop.f32.mrf.mxu0
    %1605 = vdwg.mxu0
    %v1606 = vmul.f32 %v1603, %v1456
    %1607 = vrot.lane.b32.xlu0 %v255, 120
    %v1608 = vpop.permute.xlu0 %1607
    %v1609 = vsel %vm265, %v1608, 0
    %1611 = vmatprep.subr.mxu0 0.0
    %1612 = vmatpush1.xpose.msra.mxu0 0.0
    %1613 = vmatprep.subr.mxu0 0.0
    %1614 = vmatpush1.xpose.msra.mxu0 0.0
    %1615 = vmatprep.subr.mxu0 0.0
    %1616 = vmatpush1.xpose.msra.mxu0 0.0
    %1617 = vmatprep.subr.mxu0 0.0
    %1618 = vmatpush1.xpose.msra.mxu0 0.0
    %1619 = vmatprep.subr.mxu0 0.0
    %1620 = vmatpush1.xpose.msra.mxu0 0.0
    %1621 = vmatprep.subr.mxu0 0.0
    %1622 = vmatpush1.xpose.msra.mxu0 0.0
    %1623 = vmatprep.subr.mxu0 0.0
    %1624 = vmatpush1.xpose.msra.mxu0 0.0
    %1625 = vmatprep.subr.mxu0 0.0
    %1626 = vmatpush1.xpose.msra.mxu0 0.0
    %1627 = vmatprep.subr.mxu0 0.0
    %1628 = vmatpush1.xpose.msra.mxu0 0.0
    %1629 = vmatprep.subr.mxu0 0.0
    %1630 = vmatpush1.xpose.msra.mxu0 0.0
    %1631 = vmatprep.subr.mxu0 0.0
    %1632 = vmatpush1.xpose.msra.mxu0 0.0
    %1633 = vmatprep.subr.mxu0 0.0
    %1634 = vmatpush1.xpose.msra.mxu0 0.0
    %1635 = vmatprep.subr.mxu0 0.0
    %1636 = vmatpush1.xpose.msra.mxu0 0.0
    %1637 = vmatprep.subr.mxu0 0.0
    %1638 = vmatpush1.xpose.msra.mxu0 0.0
    %1639 = vmatprep.subr.mxu0 0.0
    %1640 = vmatpush1.xpose.msra.mxu0 0.0
    %1641 = vmatprep.subr.mxu0 0.0
    %1642 = vmatpush1.xpose.msra.mxu0 %v1609
    %1643 = vmatprep.subr.mxu0 0.0
    %1644 = vmatpush2.xpose.msra.mxu0 0.0
    %1645 = vmatprep.subr.mxu0 0.0
    %1646 = vmatpush2.xpose.msra.mxu0 0.0
    %1647 = vmatprep.subr.mxu0 0.0
    %1648 = vmatpush2.xpose.msra.mxu0 0.0
    %1649 = vmatprep.subr.mxu0 0.0
    %1650 = vmatpush2.xpose.msra.mxu0 0.0
    %1651 = vmatprep.subr.mxu0 0.0
    %1652 = vmatpush2.xpose.msra.mxu0 0.0
    %1653 = vmatprep.subr.mxu0 0.0
    %1654 = vmatpush2.xpose.msra.mxu0 0.0
    %1655 = vmatprep.subr.mxu0 0.0
    %1656 = vmatpush2.xpose.msra.mxu0 0.0
    %1657 = vmatprep.subr.mxu0 0.0
    %1658 = vmatpush2.xpose.msra.mxu0 0.0
    %1659 = vmatprep.subr.mxu0 0.0
    %1660 = vmatpush2.xpose.msra.mxu0 0.0
    %1661 = vmatprep.subr.mxu0 0.0
    %1662 = vmatpush2.xpose.msra.mxu0 0.0
    %1663 = vmatprep.subr.mxu0 0.0
    %1664 = vmatpush2.xpose.msra.mxu0 0.0
    %1665 = vmatprep.subr.mxu0 0.0
    %1666 = vmatpush2.xpose.msra.mxu0 0.0
    %1667 = vmatprep.subr.mxu0 0.0
    %1668 = vmatpush2.xpose.msra.mxu0 0.0
    %1669 = vmatprep.subr.mxu0 0.0
    %1670 = vmatpush2.xpose.msra.mxu0 0.0
    %1671 = vmatprep.subr.mxu0 0.0
    %1672 = vmatpush2.xpose.msra.mxu0 0.0
    %1673 = vmatprep.subr.mxu0 0.0
    %1674 = vmatpush2.xpose.msra.mxu0 0.0
    %1675 = vmatprep.mubr.f32.mxu0 0.0
    %1676 = vmatmul.mubr.f32.gmra.mxu0 %v518
    %v1677 = vpop.f32.mrf.mxu0
    %v1678 = vadd.f32 0.0, %v1677
    %v1679 = vpop.f32.mrf.mxu0
    %1680 = vdwg.mxu0
    %v1681 = vsel %vm265, %v1678, -inf
    %1682 = vmax.xlane.f32.xlu0 %v1681
    %v1683 = vpop.xlane.xlu0 %1682
    %v1684 = vsel %vm595, %v1435, -inf
    %1685 = vmax.xlane.f32.xlu0 %v1684
    %v1686 = vpop.xlane.xlu0 %1685
    %v1687 = vmax.f32 %v1683, %v1686
    %v1688 = vsub.f32 %v1678, %v1687
    %v1689 = vmul.f32 %v1688, 1.442695
    %v1690 = vpow.pop %v1689
    %v1691 = vsub.f32 %v1435, %v1687
    %v1692 = vmul.f32 %v1691, 1.442695
    %v1693 = vpow.pop %v1692
    %v1694 = vsel %vm265, %v1690, 0.0
    %1695 = vadd.xlane.f32.xlu0 %v1694
    %v1696 = vpop.xlane.xlu0 %1695
    %1698 = vrot.lane.b32.xlu0 %v1693, 120
    %v1699 = vpop.permute.xlu0 %1698
    %v1701 = vsel %vm265, %v1699, 0.0
    %1702 = vadd.xlane.f32.xlu0 %v1701
    %v1703 = vpop.xlane.xlu0 %1702
    %v1704 = vadd.f32 %v1696, %v1703
    %v1705 = vrcp.pop %v1704
    %v1706 = vsel %vm265, %v1699, 0
    %1708 = vmatprep.subr.mxu0 0.0
    %1709 = vmatpush1.msra.mxu0 0.0
    %1710 = vmatprep.subr.mxu0 0.0
    %1711 = vmatpush1.msra.mxu0 0.0
    %1712 = vmatprep.subr.mxu0 0.0
    %1713 = vmatpush1.msra.mxu0 0.0
    %1714 = vmatprep.subr.mxu0 0.0
    %1715 = vmatpush1.msra.mxu0 0.0
    %1716 = vmatprep.subr.mxu0 0.0
    %1717 = vmatpush1.msra.mxu0 0.0
    %1718 = vmatprep.subr.mxu0 0.0
    %1719 = vmatpush1.msra.mxu0 0.0
    %1720 = vmatprep.subr.mxu0 0.0
    %1721 = vmatpush1.msra.mxu0 0.0
    %1722 = vmatprep.subr.mxu0 0.0
    %1723 = vmatpush1.msra.mxu0 0.0
    %1724 = vmatprep.subr.mxu0 0.0
    %1725 = vmatpush1.msra.mxu0 0.0
    %1726 = vmatprep.subr.mxu0 0.0
    %1727 = vmatpush1.msra.mxu0 0.0
    %1728 = vmatprep.subr.mxu0 0.0
    %1729 = vmatpush1.msra.mxu0 0.0
    %1730 = vmatprep.subr.mxu0 0.0
    %1731 = vmatpush1.msra.mxu0 0.0
    %1732 = vmatprep.subr.mxu0 0.0
    %1733 = vmatpush1.msra.mxu0 0.0
    %1734 = vmatprep.subr.mxu0 0.0
    %1735 = vmatpush1.msra.mxu0 0.0
    %1736 = vmatprep.subr.mxu0 0.0
    %1737 = vmatpush1.msra.mxu0 0.0
    %1738 = vmatprep.subr.mxu0 0.0
    %1739 = vmatpush1.msra.mxu0 %v620
    %1740 = vmatprep.subr.mxu0 0.0
    %1741 = vmatpush2.msra.mxu0 0.0
    %1742 = vmatprep.subr.mxu0 0.0
    %1743 = vmatpush2.msra.mxu0 0.0
    %1744 = vmatprep.subr.mxu0 0.0
    %1745 = vmatpush2.msra.mxu0 0.0
    %1746 = vmatprep.subr.mxu0 0.0
    %1747 = vmatpush2.msra.mxu0 0.0
    %1748 = vmatprep.subr.mxu0 0.0
    %1749 = vmatpush2.msra.mxu0 0.0
    %1750 = vmatprep.subr.mxu0 0.0
    %1751 = vmatpush2.msra.mxu0 0.0
    %1752 = vmatprep.subr.mxu0 0.0
    %1753 = vmatpush2.msra.mxu0 0.0
    %1754 = vmatprep.subr.mxu0 0.0
    %1755 = vmatpush2.msra.mxu0 0.0
    %1756 = vmatprep.subr.mxu0 0.0
    %1757 = vmatpush2.msra.mxu0 0.0
    %1758 = vmatprep.subr.mxu0 0.0
    %1759 = vmatpush2.msra.mxu0 0.0
    %1760 = vmatprep.subr.mxu0 0.0
    %1761 = vmatpush2.msra.mxu0 0.0
    %1762 = vmatprep.subr.mxu0 0.0
    %1763 = vmatpush2.msra.mxu0 0.0
    %1764 = vmatprep.subr.mxu0 0.0
    %1765 = vmatpush2.msra.mxu0 0.0
    %1766 = vmatprep.subr.mxu0 0.0
    %1767 = vmatpush2.msra.mxu0 0.0
    %1768 = vmatprep.subr.mxu0 0.0
    %1769 = vmatpush2.msra.mxu0 0.0
    %1770 = vmatprep.subr.mxu0 0.0
    %1771 = vmatpush2.msra.mxu0 0.0
    %1772 = vmatprep.mubr.f32.mxu0 0.0
    %1773 = vmatmul.mubr.f32.gmra.mxu0 %v1706
    %v1774 = vpop.f32.mrf.mxu0
    %v1775 = vadd.f32 0.0, %v1774
    %v1776 = vpop.f32.mrf.mxu0
    %1777 = vdwg.mxu0
    %1778 = vrot.lane.b32.xlu0 %v255, 88
    %v1779 = vpop.permute.xlu0 %1778
    %v1782 = vsel %vm265, %v1690, 0
    %1784 = vmatprep.subr.mxu0 0.0
    %1785 = vmatpush1.msra.mxu0 0.0
    %1786 = vmatprep.subr.mxu0 0.0
    %1787 = vmatpush1.msra.mxu0 0.0
    %1788 = vmatprep.subr.mxu0 0.0
    %1789 = vmatpush1.msra.mxu0 0.0
    %1790 = vmatprep.subr.mxu0 0.0
    %1791 = vmatpush1.msra.mxu0 0.0
    %1792 = vmatprep.subr.mxu0 0.0
    %1793 = vmatpush1.msra.mxu0 0.0
    %1794 = vmatprep.subr.mxu0 0.0
    %1795 = vmatpush1.msra.mxu0 0.0
    %1796 = vmatprep.subr.mxu0 0.0
    %1797 = vmatpush1.msra.mxu0 0.0
    %1798 = vmatprep.subr.mxu0 0.0
    %1799 = vmatpush1.msra.mxu0 0.0
    %1800 = vmatprep.subr.mxu0 0.0
    %1801 = vmatpush1.msra.mxu0 0.0
    %1802 = vmatprep.subr.mxu0 0.0
    %1803 = vmatpush1.msra.mxu0 0.0
    %1804 = vmatprep.subr.mxu0 0.0
    %1805 = vmatpush1.msra.mxu0 0.0
    %1806 = vmatprep.subr.mxu0 0.0
    %1807 = vmatpush1.msra.mxu0 0.0
    %1808 = vmatprep.subr.mxu0 0.0
    %1809 = vmatpush1.msra.mxu0 0.0
    %1810 = vmatprep.subr.mxu0 0.0
    %1811 = vmatpush1.msra.mxu0 0.0
    %1812 = vmatprep.subr.mxu0 0.0
    %1813 = vmatpush1.msra.mxu0 0.0
    %1814 = vmatprep.subr.mxu0 0.0
    %1815 = vmatpush1.msra.mxu0 %v1779
    %1816 = vmatprep.subr.mxu0 0.0
    %1817 = vmatpush2.msra.mxu0 0.0
    %1818 = vmatprep.subr.mxu0 0.0
    %1819 = vmatpush2.msra.mxu0 0.0
    %1820 = vmatprep.subr.mxu0 0.0
    %1821 = vmatpush2.msra.mxu0 0.0
    %1822 = vmatprep.subr.mxu0 0.0
    %1823 = vmatpush2.msra.mxu0 0.0
    %1824 = vmatprep.subr.mxu0 0.0
    %1825 = vmatpush2.msra.mxu0 0.0
    %1826 = vmatprep.subr.mxu0 0.0
    %1827 = vmatpush2.msra.mxu0 0.0
    %1828 = vmatprep.subr.mxu0 0.0
    %1829 = vmatpush2.msra.mxu0 0.0
    %1830 = vmatprep.subr.mxu0 0.0
    %1831 = vmatpush2.msra.mxu0 0.0
    %1832 = vmatprep.subr.mxu0 0.0
    %1833 = vmatpush2.msra.mxu0 0.0
    %1834 = vmatprep.subr.mxu0 0.0
    %1835 = vmatpush2.msra.mxu0 0.0
    %1836 = vmatprep.subr.mxu0 0.0
    %1837 = vmatpush2.msra.mxu0 0.0
    %1838 = vmatprep.subr.mxu0 0.0
    %1839 = vmatpush2.msra.mxu0 0.0
    %1840 = vmatprep.subr.mxu0 0.0
    %1841 = vmatpush2.msra.mxu0 0.0
    %1842 = vmatprep.subr.mxu0 0.0
    %1843 = vmatpush2.msra.mxu0 0.0
    %1844 = vmatprep.subr.mxu0 0.0
    %1845 = vmatpush2.msra.mxu0 0.0
    %1846 = vmatprep.subr.mxu0 0.0
    %1847 = vmatpush2.msra.mxu0 0.0
    %1848 = vmatprep.mubr.f32.mxu0 0.0
    %1849 = vmatmul.mubr.f32.gmra.mxu0 %v1782
    %v1850 = vpop.f32.mrf.mxu0
    %v1851 = vadd.f32 %v1775, %v1850
    %v1852 = vpop.f32.mrf.mxu0
    %1853 = vdwg.mxu0
    %v1854 = vmul.f32 %v1851, %v1705
    %1855 = vrot.lane.b32.xlu0 %v255, 112
    %v1856 = vpop.permute.xlu0 %1855
    %v1857 = vsel %vm265, %v1856, 0
    %1859 = vmatprep.subr.mxu0 0.0
    %1860 = vmatpush1.xpose.msra.mxu0 0.0
    %1861 = vmatprep.subr.mxu0 0.0
    %1862 = vmatpush1.xpose.msra.mxu0 0.0
    %1863 = vmatprep.subr.mxu0 0.0
    %1864 = vmatpush1.xpose.msra.mxu0 0.0
    %1865 = vmatprep.subr.mxu0 0.0
    %1866 = vmatpush1.xpose.msra.mxu0 0.0
    %1867 = vmatprep.subr.mxu0 0.0
    %1868 = vmatpush1.xpose.msra.mxu0 0.0
    %1869 = vmatprep.subr.mxu0 0.0
    %1870 = vmatpush1.xpose.msra.mxu0 0.0
    %1871 = vmatprep.subr.mxu0 0.0
    %1872 = vmatpush1.xpose.msra.mxu0 0.0
    %1873 = vmatprep.subr.mxu0 0.0
    %1874 = vmatpush1.xpose.msra.mxu0 0.0
    %1875 = vmatprep.subr.mxu0 0.0
    %1876 = vmatpush1.xpose.msra.mxu0 0.0
    %1877 = vmatprep.subr.mxu0 0.0
    %1878 = vmatpush1.xpose.msra.mxu0 0.0
    %1879 = vmatprep.subr.mxu0 0.0
    %1880 = vmatpush1.xpose.msra.mxu0 0.0
    %1881 = vmatprep.subr.mxu0 0.0
    %1882 = vmatpush1.xpose.msra.mxu0 0.0
    %1883 = vmatprep.subr.mxu0 0.0
    %1884 = vmatpush1.xpose.msra.mxu0 0.0
    %1885 = vmatprep.subr.mxu0 0.0
    %1886 = vmatpush1.xpose.msra.mxu0 0.0
    %1887 = vmatprep.subr.mxu0 0.0
    %1888 = vmatpush1.xpose.msra.mxu0 0.0
    %1889 = vmatprep.subr.mxu0 0.0
    %1890 = vmatpush1.xpose.msra.mxu0 %v1857
    %1891 = vmatprep.subr.mxu0 0.0
    %1892 = vmatpush2.xpose.msra.mxu0 0.0
    %1893 = vmatprep.subr.mxu0 0.0
    %1894 = vmatpush2.xpose.msra.mxu0 0.0
    %1895 = vmatprep.subr.mxu0 0.0
    %1896 = vmatpush2.xpose.msra.mxu0 0.0
    %1897 = vmatprep.subr.mxu0 0.0
    %1898 = vmatpush2.xpose.msra.mxu0 0.0
    %1899 = vmatprep.subr.mxu0 0.0
    %1900 = vmatpush2.xpose.msra.mxu0 0.0
    %1901 = vmatprep.subr.mxu0 0.0
    %1902 = vmatpush2.xpose.msra.mxu0 0.0
    %1903 = vmatprep.subr.mxu0 0.0
    %1904 = vmatpush2.xpose.msra.mxu0 0.0
    %1905 = vmatprep.subr.mxu0 0.0
    %1906 = vmatpush2.xpose.msra.mxu0 0.0
    %1907 = vmatprep.subr.mxu0 0.0
    %1908 = vmatpush2.xpose.msra.mxu0 0.0
    %1909 = vmatprep.subr.mxu0 0.0
    %1910 = vmatpush2.xpose.msra.mxu0 0.0
    %1911 = vmatprep.subr.mxu0 0.0
    %1912 = vmatpush2.xpose.msra.mxu0 0.0
    %1913 = vmatprep.subr.mxu0 0.0
    %1914 = vmatpush2.xpose.msra.mxu0 0.0
    %1915 = vmatprep.subr.mxu0 0.0
    %1916 = vmatpush2.xpose.msra.mxu0 0.0
    %1917 = vmatprep.subr.mxu0 0.0
    %1918 = vmatpush2.xpose.msra.mxu0 0.0
    %1919 = vmatprep.subr.mxu0 0.0
    %1920 = vmatpush2.xpose.msra.mxu0 0.0
    %1921 = vmatprep.subr.mxu0 0.0
    %1922 = vmatpush2.xpose.msra.mxu0 0.0
    %1923 = vmatprep.mubr.f32.mxu0 0.0
    %1924 = vmatmul.mubr.f32.gmra.mxu0 %v775
    %v1925 = vpop.f32.mrf.mxu0
    %v1926 = vadd.f32 0.0, %v1925
    %v1927 = vpop.f32.mrf.mxu0
    %1928 = vdwg.mxu0
    %v1929 = vsel %vm265, %v1926, -inf
    %1930 = vmax.xlane.f32.xlu0 %v1929
    %v1931 = vpop.xlane.xlu0 %1930
    %v1932 = vsel %vm852, %v1435, -inf
    %1933 = vmax.xlane.f32.xlu0 %v1932
    %v1934 = vpop.xlane.xlu0 %1933
    %v1935 = vmax.f32 %v1931, %v1934
    %v1936 = vsub.f32 %v1926, %v1935
    %v1937 = vmul.f32 %v1936, 1.442695
    %v1938 = vpow.pop %v1937
    %v1939 = vsub.f32 %v1435, %v1935
    %v1940 = vmul.f32 %v1939, 1.442695
    %v1941 = vpow.pop %v1940
    %v1942 = vsel %vm265, %v1938, 0.0
    %1943 = vadd.xlane.f32.xlu0 %v1942
    %v1944 = vpop.xlane.xlu0 %1943
    %1946 = vrot.lane.b32.xlu0 %v1941, 112
    %v1947 = vpop.permute.xlu0 %1946
    %v1949 = vsel %vm265, %v1947, 0.0
    %1950 = vadd.xlane.f32.xlu0 %v1949
    %v1951 = vpop.xlane.xlu0 %1950
    %v1952 = vadd.f32 %v1944, %v1951
    %v1953 = vrcp.pop %v1952
    %v1954 = vsel %vm265, %v1947, 0
    %1956 = vmatprep.subr.mxu0 0.0
    %1957 = vmatpush1.msra.mxu0 0.0
    %1958 = vmatprep.subr.mxu0 0.0
    %1959 = vmatpush1.msra.mxu0 0.0
    %1960 = vmatprep.subr.mxu0 0.0
    %1961 = vmatpush1.msra.mxu0 0.0
    %1962 = vmatprep.subr.mxu0 0.0
    %1963 = vmatpush1.msra.mxu0 0.0
    %1964 = vmatprep.subr.mxu0 0.0
    %1965 = vmatpush1.msra.mxu0 0.0
    %1966 = vmatprep.subr.mxu0 0.0
    %1967 = vmatpush1.msra.mxu0 0.0
    %1968 = vmatprep.subr.mxu0 0.0
    %1969 = vmatpush1.msra.mxu0 0.0
    %1970 = vmatprep.subr.mxu0 0.0
    %1971 = vmatpush1.msra.mxu0 0.0
    %1972 = vmatprep.subr.mxu0 0.0
    %1973 = vmatpush1.msra.mxu0 0.0
    %1974 = vmatprep.subr.mxu0 0.0
    %1975 = vmatpush1.msra.mxu0 0.0
    %1976 = vmatprep.subr.mxu0 0.0
    %1977 = vmatpush1.msra.mxu0 0.0
    %1978 = vmatprep.subr.mxu0 0.0
    %1979 = vmatpush1.msra.mxu0 0.0
    %1980 = vmatprep.subr.mxu0 0.0
    %1981 = vmatpush1.msra.mxu0 0.0
    %1982 = vmatprep.subr.mxu0 0.0
    %1983 = vmatpush1.msra.mxu0 0.0
    %1984 = vmatprep.subr.mxu0 0.0
    %1985 = vmatpush1.msra.mxu0 0.0
    %1986 = vmatprep.subr.mxu0 0.0
    %1987 = vmatpush1.msra.mxu0 %v876
    %1988 = vmatprep.subr.mxu0 0.0
    %1989 = vmatpush2.msra.mxu0 0.0
    %1990 = vmatprep.subr.mxu0 0.0
    %1991 = vmatpush2.msra.mxu0 0.0
    %1992 = vmatprep.subr.mxu0 0.0
    %1993 = vmatpush2.msra.mxu0 0.0
    %1994 = vmatprep.subr.mxu0 0.0
    %1995 = vmatpush2.msra.mxu0 0.0
    %1996 = vmatprep.subr.mxu0 0.0
    %1997 = vmatpush2.msra.mxu0 0.0
    %1998 = vmatprep.subr.mxu0 0.0
    %1999 = vmatpush2.msra.mxu0 0.0
    %2000 = vmatprep.subr.mxu0 0.0
    %2001 = vmatpush2.msra.mxu0 0.0
    %2002 = vmatprep.subr.mxu0 0.0
    %2003 = vmatpush2.msra.mxu0 0.0
    %2004 = vmatprep.subr.mxu0 0.0
    %2005 = vmatpush2.msra.mxu0 0.0
    %2006 = vmatprep.subr.mxu0 0.0
    %2007 = vmatpush2.msra.mxu0 0.0
    %2008 = vmatprep.subr.mxu0 0.0
    %2009 = vmatpush2.msra.mxu0 0.0
    %2010 = vmatprep.subr.mxu0 0.0
    %2011 = vmatpush2.msra.mxu0 0.0
    %2012 = vmatprep.subr.mxu0 0.0
    %2013 = vmatpush2.msra.mxu0 0.0
    %2014 = vmatprep.subr.mxu0 0.0
    %2015 = vmatpush2.msra.mxu0 0.0
    %2016 = vmatprep.subr.mxu0 0.0
    %2017 = vmatpush2.msra.mxu0 0.0
    %2018 = vmatprep.subr.mxu0 0.0
    %2019 = vmatpush2.msra.mxu0 0.0
    %2020 = vmatprep.mubr.f32.mxu0 0.0
    %2021 = vmatmul.mubr.f32.gmra.mxu0 %v1954
    %v2022 = vpop.f32.mrf.mxu0
    %v2023 = vadd.f32 0.0, %v2022
    %v2024 = vpop.f32.mrf.mxu0
    %2025 = vdwg.mxu0
    %2026 = vrot.lane.b32.xlu0 %v255, 80
    %v2027 = vpop.permute.xlu0 %2026
    %v2030 = vsel %vm265, %v1938, 0
    %2032 = vmatprep.subr.mxu0 0.0
    %2033 = vmatpush1.msra.mxu0 0.0
    %2034 = vmatprep.subr.mxu0 0.0
    %2035 = vmatpush1.msra.mxu0 0.0
    %2036 = vmatprep.subr.mxu0 0.0
    %2037 = vmatpush1.msra.mxu0 0.0
    %2038 = vmatprep.subr.mxu0 0.0
    %2039 = vmatpush1.msra.mxu0 0.0
    %2040 = vmatprep.subr.mxu0 0.0
    %2041 = vmatpush1.msra.mxu0 0.0
    %2042 = vmatprep.subr.mxu0 0.0
    %2043 = vmatpush1.msra.mxu0 0.0
    %2044 = vmatprep.subr.mxu0 0.0
    %2045 = vmatpush1.msra.mxu0 0.0
    %2046 = vmatprep.subr.mxu0 0.0
    %2047 = vmatpush1.msra.mxu0 0.0
    %2048 = vmatprep.subr.mxu0 0.0
    %2049 = vmatpush1.msra.mxu0 0.0
    %2050 = vmatprep.subr.mxu0 0.0
    %2051 = vmatpush1.msra.mxu0 0.0
    %2052 = vmatprep.subr.mxu0 0.0
    %2053 = vmatpush1.msra.mxu0 0.0
    %2054 = vmatprep.subr.mxu0 0.0
    %2055 = vmatpush1.msra.mxu0 0.0
    %2056 = vmatprep.subr.mxu0 0.0
    %2057 = vmatpush1.msra.mxu0 0.0
    %2058 = vmatprep.subr.mxu0 0.0
    %2059 = vmatpush1.msra.mxu0 0.0
    %2060 = vmatprep.subr.mxu0 0.0
    %2061 = vmatpush1.msra.mxu0 0.0
    %2062 = vmatprep.subr.mxu0 0.0
    %2063 = vmatpush1.msra.mxu0 %v2027
    %2064 = vmatprep.subr.mxu0 0.0
    %2065 = vmatpush2.msra.mxu0 0.0
    %2066 = vmatprep.subr.mxu0 0.0
    %2067 = vmatpush2.msra.mxu0 0.0
    %2068 = vmatprep.subr.mxu0 0.0
    %2069 = vmatpush2.msra.mxu0 0.0
    %2070 = vmatprep.subr.mxu0 0.0
    %2071 = vmatpush2.msra.mxu0 0.0
    %2072 = vmatprep.subr.mxu0 0.0
    %2073 = vmatpush2.msra.mxu0 0.0
    %2074 = vmatprep.subr.mxu0 0.0
    %2075 = vmatpush2.msra.mxu0 0.0
    %2076 = vmatprep.subr.mxu0 0.0
    %2077 = vmatpush2.msra.mxu0 0.0
    %2078 = vmatprep.subr.mxu0 0.0
    %2079 = vmatpush2.msra.mxu0 0.0
    %2080 = vmatprep.subr.mxu0 0.0
    %2081 = vmatpush2.msra.mxu0 0.0
    %2082 = vmatprep.subr.mxu0 0.0
    %2083 = vmatpush2.msra.mxu0 0.0
    %2084 = vmatprep.subr.mxu0 0.0
    %2085 = vmatpush2.msra.mxu0 0.0
    %2086 = vmatprep.subr.mxu0 0.0
    %2087 = vmatpush2.msra.mxu0 0.0
    %2088 = vmatprep.subr.mxu0 0.0
    %2089 = vmatpush2.msra.mxu0 0.0
    %2090 = vmatprep.subr.mxu0 0.0
    %2091 = vmatpush2.msra.mxu0 0.0
    %2092 = vmatprep.subr.mxu0 0.0
    %2093 = vmatpush2.msra.mxu0 0.0
    %2094 = vmatprep.subr.mxu0 0.0
    %2095 = vmatpush2.msra.mxu0 0.0
    %2096 = vmatprep.mubr.f32.mxu0 0.0
    %2097 = vmatmul.mubr.f32.gmra.mxu0 %v2030
    %v2098 = vpop.f32.mrf.mxu0
    %v2099 = vadd.f32 %v2023, %v2098
    %v2100 = vpop.f32.mrf.mxu0
    %2101 = vdwg.mxu0
    %v2102 = vmul.f32 %v2099, %v1953
    %2103 = vrot.lane.b32.xlu0 %v255, 104
    %v2104 = vpop.permute.xlu0 %2103
    %v2105 = vsel %vm265, %v2104, 0
    %2107 = vmatprep.subr.mxu0 0.0
    %2108 = vmatpush1.xpose.msra.mxu0 0.0
    %2109 = vmatprep.subr.mxu0 0.0
    %2110 = vmatpush1.xpose.msra.mxu0 0.0
    %2111 = vmatprep.subr.mxu0 0.0
    %2112 = vmatpush1.xpose.msra.mxu0 0.0
    %2113 = vmatprep.subr.mxu0 0.0
    %2114 = vmatpush1.xpose.msra.mxu0 0.0
    %2115 = vmatprep.subr.mxu0 0.0
    %2116 = vmatpush1.xpose.msra.mxu0 0.0
    %2117 = vmatprep.subr.mxu0 0.0
    %2118 = vmatpush1.xpose.msra.mxu0 0.0
    %2119 = vmatprep.subr.mxu0 0.0
    %2120 = vmatpush1.xpose.msra.mxu0 0.0
    %2121 = vmatprep.subr.mxu0 0.0
    %2122 = vmatpush1.xpose.msra.mxu0 0.0
    %2123 = vmatprep.subr.mxu0 0.0
    %2124 = vmatpush1.xpose.msra.mxu0 0.0
    %2125 = vmatprep.subr.mxu0 0.0
    %2126 = vmatpush1.xpose.msra.mxu0 0.0
    %2127 = vmatprep.subr.mxu0 0.0
    %2128 = vmatpush1.xpose.msra.mxu0 0.0
    %2129 = vmatprep.subr.mxu0 0.0
    %2130 = vmatpush1.xpose.msra.mxu0 0.0
    %2131 = vmatprep.subr.mxu0 0.0
    %2132 = vmatpush1.xpose.msra.mxu0 0.0
    %2133 = vmatprep.subr.mxu0 0.0
    %2134 = vmatpush1.xpose.msra.mxu0 0.0
    %2135 = vmatprep.subr.mxu0 0.0
    %2136 = vmatpush1.xpose.msra.mxu0 0.0
    %2137 = vmatprep.subr.mxu0 0.0
    %2138 = vmatpush1.xpose.msra.mxu0 %v2105
    %2139 = vmatprep.subr.mxu0 0.0
    %2140 = vmatpush2.xpose.msra.mxu0 0.0
    %2141 = vmatprep.subr.mxu0 0.0
    %2142 = vmatpush2.xpose.msra.mxu0 0.0
    %2143 = vmatprep.subr.mxu0 0.0
    %2144 = vmatpush2.xpose.msra.mxu0 0.0
    %2145 = vmatprep.subr.mxu0 0.0
    %2146 = vmatpush2.xpose.msra.mxu0 0.0
    %2147 = vmatprep.subr.mxu0 0.0
    %2148 = vmatpush2.xpose.msra.mxu0 0.0
    %2149 = vmatprep.subr.mxu0 0.0
    %2150 = vmatpush2.xpose.msra.mxu0 0.0
    %2151 = vmatprep.subr.mxu0 0.0
    %2152 = vmatpush2.xpose.msra.mxu0 0.0
    %2153 = vmatprep.subr.mxu0 0.0
    %2154 = vmatpush2.xpose.msra.mxu0 0.0
    %2155 = vmatprep.subr.mxu0 0.0
    %2156 = vmatpush2.xpose.msra.mxu0 0.0
    %2157 = vmatprep.subr.mxu0 0.0
    %2158 = vmatpush2.xpose.msra.mxu0 0.0
    %2159 = vmatprep.subr.mxu0 0.0
    %2160 = vmatpush2.xpose.msra.mxu0 0.0
    %2161 = vmatprep.subr.mxu0 0.0
    %2162 = vmatpush2.xpose.msra.mxu0 0.0
    %2163 = vmatprep.subr.mxu0 0.0
    %2164 = vmatpush2.xpose.msra.mxu0 0.0
    %2165 = vmatprep.subr.mxu0 0.0
    %2166 = vmatpush2.xpose.msra.mxu0 0.0
    %2167 = vmatprep.subr.mxu0 0.0
    %2168 = vmatpush2.xpose.msra.mxu0 0.0
    %2169 = vmatprep.subr.mxu0 0.0
    %2170 = vmatpush2.xpose.msra.mxu0 0.0
    %2171 = vmatprep.mubr.f32.mxu0 0.0
    %2172 = vmatmul.mubr.f32.gmra.mxu0 %v1031
    %v2173 = vpop.f32.mrf.mxu0
    %v2174 = vadd.f32 0.0, %v2173
    %v2175 = vpop.f32.mrf.mxu0
    %2176 = vdwg.mxu0
    %v2177 = vsel %vm265, %v2174, -inf
    %2178 = vmax.xlane.f32.xlu0 %v2177
    %v2179 = vpop.xlane.xlu0 %2178
    %v2180 = vsel %vm1108, %v1435, -inf
    %2181 = vmax.xlane.f32.xlu0 %v2180
    %v2182 = vpop.xlane.xlu0 %2181
    %v2183 = vmax.f32 %v2179, %v2182
    %v2184 = vsub.f32 %v2174, %v2183
    %v2185 = vmul.f32 %v2184, 1.442695
    %v2186 = vpow.pop %v2185
    %v2187 = vsub.f32 %v1435, %v2183
    %v2188 = vmul.f32 %v2187, 1.442695
    %v2189 = vpow.pop %v2188
    %v2190 = vsel %vm265, %v2186, 0.0
    %2191 = vadd.xlane.f32.xlu0 %v2190
    %v2192 = vpop.xlane.xlu0 %2191
    %2194 = vrot.lane.b32.xlu0 %v2189, 104
    %v2195 = vpop.permute.xlu0 %2194
    %v2197 = vsel %vm265, %v2195, 0.0
    %2198 = vadd.xlane.f32.xlu0 %v2197
    %v2199 = vpop.xlane.xlu0 %2198
    %v2200 = vadd.f32 %v2192, %v2199
    %v2201 = vrcp.pop %v2200
    %v2202 = vsel %vm265, %v2195, 0
    %2204 = vmatprep.subr.mxu0 0.0
    %2205 = vmatpush1.msra.mxu0 0.0
    %2206 = vmatprep.subr.mxu0 0.0
    %2207 = vmatpush1.msra.mxu0 0.0
    %2208 = vmatprep.subr.mxu0 0.0
    %2209 = vmatpush1.msra.mxu0 0.0
    %2210 = vmatprep.subr.mxu0 0.0
    %2211 = vmatpush1.msra.mxu0 0.0
    %2212 = vmatprep.subr.mxu0 0.0
    %2213 = vmatpush1.msra.mxu0 0.0
    %2214 = vmatprep.subr.mxu0 0.0
    %2215 = vmatpush1.msra.mxu0 0.0
    %2216 = vmatprep.subr.mxu0 0.0
    %2217 = vmatpush1.msra.mxu0 0.0
    %2218 = vmatprep.subr.mxu0 0.0
    %2219 = vmatpush1.msra.mxu0 0.0
    %2220 = vmatprep.subr.mxu0 0.0
    %2221 = vmatpush1.msra.mxu0 0.0
    %2222 = vmatprep.subr.mxu0 0.0
    %2223 = vmatpush1.msra.mxu0 0.0
    %2224 = vmatprep.subr.mxu0 0.0
    %2225 = vmatpush1.msra.mxu0 0.0
    %2226 = vmatprep.subr.mxu0 0.0
    %2227 = vmatpush1.msra.mxu0 0.0
    %2228 = vmatprep.subr.mxu0 0.0
    %2229 = vmatpush1.msra.mxu0 0.0
    %2230 = vmatprep.subr.mxu0 0.0
    %2231 = vmatpush1.msra.mxu0 0.0
    %2232 = vmatprep.subr.mxu0 0.0
    %2233 = vmatpush1.msra.mxu0 0.0
    %2234 = vmatprep.subr.mxu0 0.0
    %2235 = vmatpush1.msra.mxu0 %v1132
    %2236 = vmatprep.subr.mxu0 0.0
    %2237 = vmatpush2.msra.mxu0 0.0
    %2238 = vmatprep.subr.mxu0 0.0
    %2239 = vmatpush2.msra.mxu0 0.0
    %2240 = vmatprep.subr.mxu0 0.0
    %2241 = vmatpush2.msra.mxu0 0.0
    %2242 = vmatprep.subr.mxu0 0.0
    %2243 = vmatpush2.msra.mxu0 0.0
    %2244 = vmatprep.subr.mxu0 0.0
    %2245 = vmatpush2.msra.mxu0 0.0
    %2246 = vmatprep.subr.mxu0 0.0
    %2247 = vmatpush2.msra.mxu0 0.0
    %2248 = vmatprep.subr.mxu0 0.0
    %2249 = vmatpush2.msra.mxu0 0.0
    %2250 = vmatprep.subr.mxu0 0.0
    %2251 = vmatpush2.msra.mxu0 0.0
    %2252 = vmatprep.subr.mxu0 0.0
    %2253 = vmatpush2.msra.mxu0 0.0
    %2254 = vmatprep.subr.mxu0 0.0
    %2255 = vmatpush2.msra.mxu0 0.0
    %2256 = vmatprep.subr.mxu0 0.0
    %2257 = vmatpush2.msra.mxu0 0.0
    %2258 = vmatprep.subr.mxu0 0.0
    %2259 = vmatpush2.msra.mxu0 0.0
    %2260 = vmatprep.subr.mxu0 0.0
    %2261 = vmatpush2.msra.mxu0 0.0
    %2262 = vmatprep.subr.mxu0 0.0
    %2263 = vmatpush2.msra.mxu0 0.0
    %2264 = vmatprep.subr.mxu0 0.0
    %2265 = vmatpush2.msra.mxu0 0.0
    %2266 = vmatprep.subr.mxu0 0.0
    %2267 = vmatpush2.msra.mxu0 0.0
    %2268 = vmatprep.mubr.f32.mxu0 0.0
    %2269 = vmatmul.mubr.f32.gmra.mxu0 %v2202
    %v2270 = vpop.f32.mrf.mxu0
    %v2271 = vadd.f32 0.0, %v2270
    %v2272 = vpop.f32.mrf.mxu0
    %2273 = vdwg.mxu0
    %2274 = vrot.lane.b32.xlu0 %v255, 72
    %v2275 = vpop.permute.xlu0 %2274
    %v2278 = vsel %vm265, %v2186, 0
    %2280 = vmatprep.subr.mxu0 0.0
    %2281 = vmatpush1.msra.mxu0 0.0
    %2282 = vmatprep.subr.mxu0 0.0
    %2283 = vmatpush1.msra.mxu0 0.0
    %2284 = vmatprep.subr.mxu0 0.0
    %2285 = vmatpush1.msra.mxu0 0.0
    %2286 = vmatprep.subr.mxu0 0.0
    %2287 = vmatpush1.msra.mxu0 0.0
    %2288 = vmatprep.subr.mxu0 0.0
    %2289 = vmatpush1.msra.mxu0 0.0
    %2290 = vmatprep.subr.mxu0 0.0
    %2291 = vmatpush1.msra.mxu0 0.0
    %2292 = vmatprep.subr.mxu0 0.0
    %2293 = vmatpush1.msra.mxu0 0.0
    %2294 = vmatprep.subr.mxu0 0.0
    %2295 = vmatpush1.msra.mxu0 0.0
    %2296 = vmatprep.subr.mxu0 0.0
    %2297 = vmatpush1.msra.mxu0 0.0
    %2298 = vmatprep.subr.mxu0 0.0
    %2299 = vmatpush1.msra.mxu0 0.0
    %2300 = vmatprep.subr.mxu0 0.0
    %2301 = vmatpush1.msra.mxu0 0.0
    %2302 = vmatprep.subr.mxu0 0.0
    %2303 = vmatpush1.msra.mxu0 0.0
    %2304 = vmatprep.subr.mxu0 0.0
    %2305 = vmatpush1.msra.mxu0 0.0
    %2306 = vmatprep.subr.mxu0 0.0
    %2307 = vmatpush1.msra.mxu0 0.0
    %2308 = vmatprep.subr.mxu0 0.0
    %2309 = vmatpush1.msra.mxu0 0.0
    %2310 = vmatprep.subr.mxu0 0.0
    %2311 = vmatpush1.msra.mxu0 %v2275
    %2312 = vmatprep.subr.mxu0 0.0
    %2313 = vmatpush2.msra.mxu0 0.0
    %2314 = vmatprep.subr.mxu0 0.0
    %2315 = vmatpush2.msra.mxu0 0.0
    %2316 = vmatprep.subr.mxu0 0.0
    %2317 = vmatpush2.msra.mxu0 0.0
    %2318 = vmatprep.subr.mxu0 0.0
    %2319 = vmatpush2.msra.mxu0 0.0
    %2320 = vmatprep.subr.mxu0 0.0
    %2321 = vmatpush2.msra.mxu0 0.0
    %2322 = vmatprep.subr.mxu0 0.0
    %2323 = vmatpush2.msra.mxu0 0.0
    %2324 = vmatprep.subr.mxu0 0.0
    %2325 = vmatpush2.msra.mxu0 0.0
    %2326 = vmatprep.subr.mxu0 0.0
    %2327 = vmatpush2.msra.mxu0 0.0
    %2328 = vmatprep.subr.mxu0 0.0
    %2329 = vmatpush2.msra.mxu0 0.0
    %2330 = vmatprep.subr.mxu0 0.0
    %2331 = vmatpush2.msra.mxu0 0.0
    %2332 = vmatprep.subr.mxu0 0.0
    %2333 = vmatpush2.msra.mxu0 0.0
    %2334 = vmatprep.subr.mxu0 0.0
    %2335 = vmatpush2.msra.mxu0 0.0
    %2336 = vmatprep.subr.mxu0 0.0
    %2337 = vmatpush2.msra.mxu0 0.0
    %2338 = vmatprep.subr.mxu0 0.0
    %2339 = vmatpush2.msra.mxu0 0.0
    %2340 = vmatprep.subr.mxu0 0.0
    %2341 = vmatpush2.msra.mxu0 0.0
    %2342 = vmatprep.subr.mxu0 0.0
    %2343 = vmatpush2.msra.mxu0 0.0
    %2344 = vmatprep.mubr.f32.mxu0 0.0
    %2345 = vmatmul.mubr.f32.gmra.mxu0 %v2278
    %v2346 = vpop.f32.mrf.mxu0
    %v2347 = vadd.f32 %v2271, %v2346
    %v2348 = vpop.f32.mrf.mxu0
    %2349 = vdwg.mxu0
    %v2350 = vmul.f32 %v2347, %v2201
    %2352 = vrot.lane.b32.xlu0 %v1854, 8
    %v2353 = vpop.permute.xlu0 %2352
    %2356 = vrot.lane.b32.xlu0 %v2102, 16
    %v2357 = vpop.permute.xlu0 %2356
    %2360 = vrot.lane.b32.xlu0 %v2350, 24
    %v2361 = vpop.permute.xlu0 %2360
    %v2363 = vsel %vm265, %v1606, %v2353
    %v2364 = vsel %vm144, %v2363, %v2357
    %v2365 = vsel %vm1297, %v2364, %v2361
    %v2366 = vpack.c.bf16 %v2365, %v2365
    %v2368 = vsel %vm213, %v2366, 0
    %2370 = vmatprep.subr.bf16.mxu0 0
    %2371 = vmatpush1.bf16.msra.mxu0 0
    %2372 = vmatprep.subr.bf16.mxu0 0
    %2373 = vmatpush1.bf16.msra.mxu0 0
    %2374 = vmatprep.subr.bf16.mxu0 0
    %2375 = vmatpush1.bf16.msra.mxu0 0
    %2376 = vmatprep.subr.bf16.mxu0 0
    %2377 = vmatpush1.bf16.msra.mxu0 0
    %2378 = vmatprep.subr.bf16.mxu0 0
    %2379 = vmatpush1.bf16.msra.mxu0 0
    %2380 = vmatprep.subr.bf16.mxu0 0
    %2381 = vmatpush1.bf16.msra.mxu0 0
    %2382 = vmatprep.subr.bf16.mxu0 0
    %2383 = vmatpush1.bf16.msra.mxu0 %v1315
    %2384 = vmatprep.subr.bf16.mxu0 0
    %2385 = vmatpush1.bf16.msra.mxu0 %v1314
    %2386 = vmatprep.subr.bf16.mxu0 0
    %2387 = vmatpush2.bf16.msra.mxu0 0
    %2388 = vmatprep.subr.bf16.mxu0 0
    %2389 = vmatpush2.bf16.msra.mxu0 0
    %2390 = vmatprep.subr.bf16.mxu0 0
    %2391 = vmatpush2.bf16.msra.mxu0 0
    %2392 = vmatprep.subr.bf16.mxu0 0
    %2393 = vmatpush2.bf16.msra.mxu0 0
    %2394 = vmatprep.subr.bf16.mxu0 0
    %2395 = vmatpush2.bf16.msra.mxu0 0
    %2396 = vmatprep.subr.bf16.mxu0 0
    %2397 = vmatpush2.bf16.msra.mxu0 0
    %2398 = vmatprep.subr.bf16.mxu0 0
    %2399 = vmatpush2.bf16.msra.mxu0 0
    %2400 = vmatprep.subr.bf16.mxu0 0
    %2401 = vmatpush2.bf16.msra.mxu0 0
    %2402 = vmatprep.mubr.bf16.mxu0 0
    %2403 = vmatmul.mubr.bf16.gmra.mxu0 %v2368
    %v2404 = vpop.f32.mrf.mxu0
    %v2405 = vadd.f32 %v1304, %v2404
    %v2406 = vpop.f32.mrf.mxu0
    %v2407 = vpop.f32.mrf.mxu0
    %v2408 = vpop.f32.mrf.mxu0
    %2409 = vdwg.mxu0
    %s2410 = scalar_lea.vmem [#allocation14], 8
    %2411 = vst.msk [vmem:[%s2410] sm:$0xff] %vm213, %v2405
    // Predicated region
    $region70: #{tpu_custom_call.1} parent=1 // pred_check
      _
    $region71: #{tpu_custom_call.1} parent=1 // pred_check_branch
      %2413 = sbr.rel (0) target = $region73
    $region72: #{tpu_custom_call.1} parent=1 // pred_region
      %s2415 = ssub.s32 256, 256
      %2416 = vsyncadd [#allocation4], %s2415
      %s2417 = sshll.u32 [#allocation14], 4
      %s2418 = int_to_ptr.vmem [resolvable:$true] %s2417
      %2423 = dma.vmem_to_hbm [thread:$0]  %s2418, 256, %s10, [#allocation4], 128, 128, 8
    $region73: #{tpu_custom_call.1} parent=1 // pred_fallthru
      _
    // Predicated region
    $region74: #{tpu_custom_call.1} parent=1 // pred_check
      _
    $region75: #{tpu_custom_call.1} parent=1 // pred_check_branch
      %2425 = sbr.rel (0) target = $region77
    $region76: #{tpu_custom_call.1} parent=1 // pred_region
      %2426 = dma.done [#allocation4], 256
    $region77: #{tpu_custom_call.1} parent=1 // pred_fallthru
      _
    %2427 = vsyncpa [#allocation3], 1
    %2428 = vsyncpa [#allocation6], 1
    %2429 = vsyncpa [#allocation9], 1
    %2430 = vsyncpa [#allocation12], 1
    %2431 = vsyncpa [#allocation4], 1

</llo_original>
